<compile_context>
chip_gen: v7x
topology: tpu7x:2x2x1
jax: 0.10.0
libtpu: 0.0.40
codegen_flags: <defaults>
</compile_context>

<pallas_src>
import functools

import jax
import jax.numpy as jnp
from jax import lax
from jax.experimental import pallas as pl
from jax.experimental.pallas import tpu as pltpu

# ---------------- synthetic BERT config ----------------
VOCAB = 100
HIDDEN = 32
N_LAYERS = 2
N_HEADS = 2
HEAD_DIM = HIDDEN // N_HEADS
INTERMEDIATE = 64
MAX_POS = 16
TYPE_VOCAB = 2
LN_EPS = 1e-12


def _ln(x, g, b, eps=LN_EPS):
    mean = jnp.mean(x, axis=-1, keepdims=True)
    xc = x - mean
    var = jnp.mean(xc * xc, axis=-1, keepdims=True)
    return xc * lax.rsqrt(var + eps) * g + b


# ---------------- fused encoder kernel (whole stack in one grid step) ----------------
def _encoder_kernel(starts_ref,                      # scalar prefetch (SMEM): (B*U,) int32
                    emb_ref, mask_ref, embln_ref,    # per-batch-block / shared inputs
                    wqkv_ref, bqkv_ref, wo_ref, bo_ref, lngb_ref,
                    w1_ref, b1_ref, w2_ref, b2_ref,  # full stacked [L, ...] weights (VMEM)
                    out_ref,                         # (TB, U, HIDDEN) gathered rows
                    *, seq_len, unit_num, tb, scale):
    b = pl.program_id(0)                             # batch-block index (parallel axis)
    rows = tb * seq_len

    # ---- embedding LayerNorm (emb block is read exactly once, at the top)
    e = emb_ref[...].astype(jnp.float32).reshape(rows, HIDDEN)
    h0 = _ln(e, embln_ref[0:1, :], embln_ref[1:2, :])

    # ---- full encoder stack as an in-body loop over layers (no grid axis)
    def layer_body(l, h):
        # fused Q|K|V projection for all TB*S rows: one MXU issue
        qkv = jnp.dot(h, wqkv_ref[l], preferred_element_type=jnp.float32) + bqkv_ref[l]
        q = qkv[:, 0 * HIDDEN:1 * HIDDEN]
        k = qkv[:, 1 * HIDDEN:2 * HIDDEN]
        v = qkv[:, 2 * HIDDEN:3 * HIDDEN]

        ctx_rows = []
        for t in range(tb):                                      # static, small
            sl = slice(t * seq_len, (t + 1) * seq_len)
            # heads as a leading batch dim -> ONE batched dot_general per matmul
            qh = jnp.stack([q[sl, hh * HEAD_DIM:(hh + 1) * HEAD_DIM]
                            for hh in range(N_HEADS)], axis=0)   # (NH, S, Dh)
            kh = jnp.stack([k[sl, hh * HEAD_DIM:(hh + 1) * HEAD_DIM]
                            for hh in range(N_HEADS)], axis=0)
            vh = jnp.stack([v[sl, hh * HEAD_DIM:(hh + 1) * HEAD_DIM]
                            for hh in range(N_HEADS)], axis=0)

            s = jnp.einsum('hqd,hkd->hqk', qh, kh,
                           preferred_element_type=jnp.float32) * scale    # (NH, S, S)
            s = s + mask_ref[t]                                  # (1, S) additive mask
            s = s - jnp.max(s, axis=-1, keepdims=True)
            p = jnp.exp(s)
            p = p / jnp.sum(p, axis=-1, keepdims=True)           # exact normalization
            ctx = jnp.einsum('hqk,hkd->hqd', p, vh,
                             preferred_element_type=jnp.float32)          # (NH, S, Dh)
            ctx = jnp.concatenate([ctx[hh] for hh in range(N_HEADS)], axis=-1)  # (S, H)
            ctx_rows.append(ctx)
        ctx_all = ctx_rows[0] if tb == 1 else jnp.concatenate(ctx_rows, axis=0)

        # single output projection for the whole block + residual + LN1
        attn_out = jnp.dot(ctx_all, wo_ref[l],
                           preferred_element_type=jnp.float32) + bo_ref[l]
        lngb = lngb_ref[l]                                       # (4, H): ln1_g, ln1_b, ln2_g, ln2_b
        h1 = _ln(h + attn_out, lngb[0:1, :], lngb[1:2, :])

        # FFN + gelu + residual + LN2 (elementwise math stays f32)
        ff = jnp.dot(h1, w1_ref[l], preferred_element_type=jnp.float32) + b1_ref[l]
        # TODO(synk): PyTorch BertModel uses exact (erf) gelu; tanh approx differs ~1e-3.
        ff = jax.nn.gelu(ff, approximate=True)
        ff = jnp.dot(ff, w2_ref[l], preferred_element_type=jnp.float32) + b2_ref[l]
        h2 = _ln(h1 + ff, lngb[2:3, :], lngb[3:4, :])
        return h2

    h = lax.fori_loop(0, N_LAYERS, layer_body, h0, unroll=True)

    # ---- `starts` row gather as a one-hot matmul: one MXU op + one (U,H) store
    col_ids = lax.broadcasted_iota(jnp.int32, (unit_num, seq_len), 1)
    row_ids = lax.broadcasted_iota(jnp.int32, (unit_num, seq_len), 0)
    for t in range(tb):                                          # static, small
        base = (b * tb + t) * unit_num
        onehot = jnp.zeros((unit_num, seq_len), jnp.float32)
        for u in range(unit_num):
            idx = jnp.clip(starts_ref[base + u], 0, seq_len - 1)   # clamp: no OOB
            onehot = jnp.where((row_ids == u) & (col_ids == idx), 1.0, onehot)
        h_t = h[t * seq_len:(t + 1) * seq_len, :]
        out_ref[t] = jnp.dot(onehot, h_t, preferred_element_type=jnp.float32)


# ---------------- parameter init (deterministic, synthetic) ----------------
def init_params(key):
    keys = iter(jax.random.split(key, 4 + N_LAYERS * 8))

    def norm(shape, scale=0.02):
        return (scale * jax.random.normal(next(keys), shape)).astype(jnp.float32)

    params = {
        "word_emb": norm((VOCAB, HIDDEN)),
        "pos_emb": norm((MAX_POS, HIDDEN)),
        "type_emb": norm((TYPE_VOCAB, HIDDEN)),
        "emb_ln_gb": jnp.stack([jnp.ones(HIDDEN), jnp.zeros(HIDDEN)]).astype(jnp.float32),
    }

    wqkv, bqkv, wo, bo, lngb, w1, b1, w2, b2 = ([] for _ in range(9))
    for _ in range(N_LAYERS):
        wq, wk, wv = norm((HIDDEN, HIDDEN)), norm((HIDDEN, HIDDEN)), norm((HIDDEN, HIDDEN))
        wqkv.append(jnp.concatenate([wq, wk, wv], axis=1))          # (H, 3H)
        bqkv.append(jnp.zeros((1, 3 * HIDDEN), jnp.float32))
        wo.append(norm((HIDDEN, HIDDEN)))
        bo.append(jnp.zeros((1, HIDDEN), jnp.float32))
        lngb.append(jnp.stack([jnp.ones(HIDDEN), jnp.zeros(HIDDEN),
                               jnp.ones(HIDDEN), jnp.zeros(HIDDEN)]).astype(jnp.float32))
        w1.append(norm((HIDDEN, INTERMEDIATE)))
        b1.append(jnp.zeros((1, INTERMEDIATE), jnp.float32))
        w2.append(norm((INTERMEDIATE, HIDDEN)))
        b2.append(jnp.zeros((1, HIDDEN), jnp.float32))

    params.update({
        "wqkv": jnp.stack(wqkv), "bqkv": jnp.stack(bqkv),
        "wo": jnp.stack(wo), "bo": jnp.stack(bo),
        "ln_gb": jnp.stack(lngb),
        "w1": jnp.stack(w1), "b1": jnp.stack(b1),
        "w2": jnp.stack(w2), "b2": jnp.stack(b2),
    })
    return params


# ---------------- forward pass (embedding lookup in JAX, everything else fused) ----------------
def bert_forward(params, input_ids, attn_mask, starts, *, batch_block=1):
    B, S = input_ids.shape
    U = starts.shape[1]
    TB = batch_block
    assert B % TB == 0, "batch must be divisible by the batch block"

    # embedding table lookups are glue (gathers from HBM tables)
    pos_ids = jnp.arange(S)
    emb = (params["word_emb"][input_ids]
           + params["pos_emb"][pos_ids][None, :, :]
           + params["type_emb"][jnp.zeros_like(input_ids)]).astype(jnp.float32)   # (B, S, H)

    # tiny per-batch additive mask row (no (B*H,1,S) tensor)
    add_mask = ((1.0 - attn_mask.astype(jnp.float32)) * -10000.0)[:, None, :]     # (B, 1, S)

    scale = 1.0 / (HEAD_DIM ** 0.5)
    L = N_LAYERS

    def weight_spec(shape):
        # full (untiled) weight block; same block every grid step -> fetched once
        return pl.BlockSpec(shape, lambda b, s, _n=len(shape): (0,) * _n)

    grid_spec = pltpu.PrefetchScalarGridSpec(
        num_scalar_prefetch=1,                       # flattened starts -> SMEM
        grid=(B // TB,),                             # batch blocks only (layers in-body)
        in_specs=[
            pl.BlockSpec((TB, S, HIDDEN), lambda b, s: (b, 0, 0)),     # emb block
            pl.BlockSpec((TB, 1, S), lambda b, s: (b, 0, 0)),          # additive mask
            weight_spec((2, HIDDEN)),                                  # emb LN g/b
            weight_spec((L, HIDDEN, 3 * HIDDEN)),                      # wqkv
            weight_spec((L, 1, 3 * HIDDEN)),                           # bqkv
            weight_spec((L, HIDDEN, HIDDEN)),                          # wo
            weight_spec((L, 1, HIDDEN)),                               # bo
            weight_spec((L, 4, HIDDEN)),                               # ln1/ln2 g,b
            weight_spec((L, HIDDEN, INTERMEDIATE)),                    # w1
            weight_spec((L, 1, INTERMEDIATE)),                         # b1
            weight_spec((L, INTERMEDIATE, HIDDEN)),                    # w2
            weight_spec((L, 1, HIDDEN)),                               # b2
        ],
        out_specs=pl.BlockSpec((TB, U, HIDDEN), lambda b, s: (b, 0, 0)),
    )

    kernel = functools.partial(_encoder_kernel, seq_len=S, unit_num=U, tb=TB, scale=scale)

    return pl.pallas_call(
        kernel,
        grid_spec=grid_spec,
        out_shape=jax.ShapeDtypeStruct((B, U, HIDDEN), jnp.float32),
        compiler_params=pltpu.CompilerParams(
            dimension_semantics=("parallel",),       # >=2 batch blocks span v7x's 2 TCs
            vmem_limit_bytes=32 * 1024 * 1024),      # explicit budget (v7x has 64 MiB total)
    )(starts.reshape(-1).astype(jnp.int32), emb, add_mask, params["emb_ln_gb"],
      params["wqkv"], params["bqkv"], params["wo"], params["bo"],
      params["ln_gb"], params["w1"], params["b1"], params["w2"], params["b2"])


# ---------------- pure-JAX reference (for correctness check) ----------------
def bert_reference(params, input_ids, attn_mask, starts):
    B, S = input_ids.shape
    pos_ids = jnp.arange(S)
    emb = (params["word_emb"][input_ids]
           + params["pos_emb"][pos_ids][None, :, :]
           + params["type_emb"][jnp.zeros_like(input_ids)]).astype(jnp.float32)
    h = _ln(emb, params["emb_ln_gb"][0][None, None], params["emb_ln_gb"][1][None, None])
    add_mask = ((1.0 - attn_mask.astype(jnp.float32)) * -10000.0)[:, None, None, :]
    scale = 1.0 / (HEAD_DIM ** 0.5)
    for l in range(N_LAYERS):
        qkv = h @ params["wqkv"][l] + params["bqkv"][l]
        q, k, v = (qkv[..., i * HIDDEN:(i + 1) * HIDDEN] for i in range(3))
        def split(x):
            return x.reshape(B, S, N_HEADS, HEAD_DIM).transpose(0, 2, 1, 3)
        qh, kh, vh = split(q), split(k), split(v)
        s = jnp.einsum('bhqd,bhkd->bhqk', qh, kh) * scale + add_mask
        s = s - jnp.max(s, axis=-1, keepdims=True)
        p = jnp.exp(s)
        p = p / jnp.sum(p, axis=-1, keepdims=True)
        ctx = jnp.einsum('bhqk,bhkd->bhqd', p, vh).transpose(0, 2, 1, 3).reshape(B, S, HIDDEN)
        attn_out = ctx @ params["wo"][l] + params["bo"][l]
        g1, b1_, g2, b2_ = (params["ln_gb"][l][i][None, None] for i in range(4))
        h1 = _ln(h + attn_out, g1, b1_)
        ff = h1 @ params["w1"][l] + params["b1"][l]
        ff = jax.nn.gelu(ff, approximate=True)
        ff = ff @ params["w2"][l] + params["b2"][l]
        h = _ln(h1 + ff, g2, b2_)
    return jnp.take_along_axis(h, starts[..., None].astype(jnp.int32), axis=-2)


if __name__ == "__main__":
    key = jax.random.PRNGKey(0)
    k_param, k_ids, k_starts = jax.random.split(key, 3)

    B, S, U = 2, 8, 3
    params = init_params(k_param)

    var_h = jax.random.randint(k_ids, (B, S), 0, VOCAB, dtype=jnp.int32)
    attn_mask = jnp.array([[1, 1, 1, 1, 1, 1, 1, 1],
                           [1, 1, 1, 1, 1, 1, 0, 0]], dtype=jnp.int32)
    starts = jax.random.randint(k_starts, (B, U), 0, S, dtype=jnp.int32)

    out = jax.jit(bert_forward)(params, var_h, attn_mask, starts)
    out = jax.block_until_ready(out)

    ref = bert_reference(params, var_h, attn_mask, starts)

    assert out.shape == (B, U, HIDDEN)
    assert bool(jnp.all(jnp.isfinite(out)))
    assert bool(jnp.allclose(out, ref, rtol=2e-2, atol=2e-2))
    print("KERNEL_OK")
</pallas_src>

<mosaic_0001>
module attributes {stable_mosaic.version = 11 : i64} {
  func.func @_encoder_kernel(%arg0: i32, %arg1: memref<6xi32, #tpu.memory_space<smem>>, %arg2: memref<1x8x32xf32, #tpu.memory_space<vmem>>, %arg3: memref<1x1x8xf32, #tpu.memory_space<vmem>>, %arg4: memref<2x32xf32, #tpu.memory_space<vmem>>, %arg5: memref<2x32x96xf32, #tpu.memory_space<vmem>>, %arg6: memref<2x1x96xf32, #tpu.memory_space<vmem>>, %arg7: memref<2x32x32xf32, #tpu.memory_space<vmem>>, %arg8: memref<2x1x32xf32, #tpu.memory_space<vmem>>, %arg9: memref<2x4x32xf32, #tpu.memory_space<vmem>>, %arg10: memref<2x32x64xf32, #tpu.memory_space<vmem>>, %arg11: memref<2x1x64xf32, #tpu.memory_space<vmem>>, %arg12: memref<2x64x32xf32, #tpu.memory_space<vmem>>, %arg13: memref<2x1x32xf32, #tpu.memory_space<vmem>>, %arg14: memref<1x3x32xf32, #tpu.memory_space<vmem>>) attributes {dimension_semantics = [#tpu.dimension_semantics<parallel>], iteration_bounds = array<i64: 2>, scalar_prefetch = 1 : i64, scratch_operands = 0 : i64, tpu.core_type = #tpu.core_type<tc>, window_params = [{transform_indices = @transform_0, window_bounds = array<i64: 1, 8, 32>}, {transform_indices = @transform_1, window_bounds = array<i64: 1, 1, 8>}, {pipeline_mode = #tpu.pipeline_mode<synchronous>, transform_indices = @transform_2, window_bounds = array<i64: 2, 32>}, {pipeline_mode = #tpu.pipeline_mode<synchronous>, transform_indices = @transform_3, window_bounds = array<i64: 2, 32, 96>}, {pipeline_mode = #tpu.pipeline_mode<synchronous>, transform_indices = @transform_4, window_bounds = array<i64: 2, 1, 96>}, {pipeline_mode = #tpu.pipeline_mode<synchronous>, transform_indices = @transform_5, window_bounds = array<i64: 2, 32, 32>}, {pipeline_mode = #tpu.pipeline_mode<synchronous>, transform_indices = @transform_6, window_bounds = array<i64: 2, 1, 32>}, {pipeline_mode = #tpu.pipeline_mode<synchronous>, transform_indices = @transform_7, window_bounds = array<i64: 2, 4, 32>}, {pipeline_mode = #tpu.pipeline_mode<synchronous>, transform_indices = @transform_8, window_bounds = array<i64: 2, 32, 64>}, {pipeline_mode = #tpu.pipeline_mode<synchronous>, transform_indices = @transform_9, window_bounds = array<i64: 2, 1, 64>}, {pipeline_mode = #tpu.pipeline_mode<synchronous>, transform_indices = @transform_10, window_bounds = array<i64: 2, 64, 32>}, {pipeline_mode = #tpu.pipeline_mode<synchronous>, transform_indices = @transform_11, window_bounds = array<i64: 2, 1, 32>}, {transform_indices = @transform_12, window_bounds = array<i64: 1, 3, 32>}]} {
    %c0 = arith.constant 0 : index
    %c0_0 = arith.constant 0 : index
    %c0_1 = arith.constant 0 : index
    %0 = vector.load %arg2[%c0, %c0_0, %c0_1] : memref<1x8x32xf32, #tpu.memory_space<vmem>>, vector<1x8x32xf32>
    %1 = vector.shape_cast %0 : vector<1x8x32xf32> to vector<8x32xf32>
    %c0_2 = arith.constant 0 : index
    %c0_3 = arith.constant 0 : index
    %2 = vector.load %arg4[%c0_2, %c0_3] : memref<2x32xf32, #tpu.memory_space<vmem>>, vector<1x32xf32>
    %c1 = arith.constant 1 : index
    %c0_4 = arith.constant 0 : index
    %3 = vector.load %arg4[%c1, %c0_4] : memref<2x32xf32, #tpu.memory_space<vmem>>, vector<1x32xf32>
    %cst = arith.constant dense<0.000000e+00> : vector<8xf32>
    %4 = vector.multi_reduction <add>, %1, %cst [1] : vector<8x32xf32> to vector<8xf32>
    %5 = vector.shape_cast %4 : vector<8xf32> to vector<8x1xf32>
    %cst_5 = arith.constant 3.200000e+01 : f32
    %6 = vector.broadcast %cst_5 : f32 to vector<8x1xf32>
    %7 = arith.divf %5, %6 : vector<8x1xf32>
    %8 = vector.broadcast %7 : vector<8x1xf32> to vector<8x32xf32>
    %9 = arith.subf %1, %8 : vector<8x32xf32>
    %10 = arith.mulf %9, %9 : vector<8x32xf32>
    %cst_6 = arith.constant dense<0.000000e+00> : vector<8xf32>
    %11 = vector.multi_reduction <add>, %10, %cst_6 [1] : vector<8x32xf32> to vector<8xf32>
    %12 = vector.shape_cast %11 : vector<8xf32> to vector<8x1xf32>
    %cst_7 = arith.constant 3.200000e+01 : f32
    %13 = vector.broadcast %cst_7 : f32 to vector<8x1xf32>
    %14 = arith.divf %12, %13 : vector<8x1xf32>
    %cst_8 = arith.constant 9.99999996E-13 : f32
    %15 = vector.broadcast %cst_8 : f32 to vector<8x1xf32>
    %16 = arith.addf %14, %15 : vector<8x1xf32>
    %17 = math.rsqrt %16 : vector<8x1xf32>
    %18 = vector.broadcast %17 : vector<8x1xf32> to vector<8x32xf32>
    %19 = arith.mulf %9, %18 : vector<8x32xf32>
    %20 = vector.broadcast %2 : vector<1x32xf32> to vector<8x32xf32>
    %21 = arith.mulf %19, %20 : vector<8x32xf32>
    %22 = vector.broadcast %3 : vector<1x32xf32> to vector<8x32xf32>
    %23 = arith.addf %21, %22 : vector<8x32xf32>
    %c0_i32 = arith.constant 0 : i32
    %24 = arith.index_cast %c0_i32 : i32 to index
    %c0_9 = arith.constant 0 : index
    %c0_10 = arith.constant 0 : index
    %25 = vector.load %arg5[%24, %c0_9, %c0_10] : memref<2x32x96xf32, #tpu.memory_space<vmem>>, vector<1x32x96xf32>
    %26 = vector.shape_cast %25 : vector<1x32x96xf32> to vector<32x96xf32>
    %cst_11 = arith.constant dense<0.000000e+00> : vector<8x96xf32>
    %27 = tpu.matmul %23, %26, %cst_11 {dimension_numbers = #tpu.dot_dimension_numbers<[1], [0], [0], [1], [0, 0, 1, 1], [], []>} : vector<8x32xf32>, vector<32x96xf32>, vector<8x96xf32> -> vector<8x96xf32>
    %28 = arith.index_cast %c0_i32 : i32 to index
    %c0_12 = arith.constant 0 : index
    %c0_13 = arith.constant 0 : index
    %29 = vector.load %arg6[%28, %c0_12, %c0_13] : memref<2x1x96xf32, #tpu.memory_space<vmem>>, vector<1x1x96xf32>
    %30 = vector.shape_cast %29 : vector<1x1x96xf32> to vector<1x96xf32>
    %31 = vector.broadcast %30 : vector<1x96xf32> to vector<8x96xf32>
    %32 = arith.addf %27, %31 : vector<8x96xf32>
    %33 = vector.extract_strided_slice %32 {offsets = [0, 0], sizes = [8, 32], strides = [1, 1]} : vector<8x96xf32> to vector<8x32xf32>
    %34 = vector.extract_strided_slice %32 {offsets = [0, 32], sizes = [8, 32], strides = [1, 1]} : vector<8x96xf32> to vector<8x32xf32>
    %35 = vector.extract_strided_slice %32 {offsets = [0, 64], sizes = [8, 32], strides = [1, 1]} : vector<8x96xf32> to vector<8x32xf32>
    %36 = vector.extract_strided_slice %33 {offsets = [0, 0], sizes = [8, 16], strides = [1, 1]} : vector<8x32xf32> to vector<8x16xf32>
    %37 = vector.extract_strided_slice %33 {offsets = [0, 16], sizes = [8, 16], strides = [1, 1]} : vector<8x32xf32> to vector<8x16xf32>
    %38 = vector.shape_cast %36 : vector<8x16xf32> to vector<1x8x16xf32>
    %39 = vector.shape_cast %37 : vector<8x16xf32> to vector<1x8x16xf32>
    %40 = tpu.concatenate %38, %39 in 0 : vector<1x8x16xf32>, vector<1x8x16xf32> -> vector<2x8x16xf32>
    %41 = vector.extract_strided_slice %34 {offsets = [0, 0], sizes = [8, 16], strides = [1, 1]} : vector<8x32xf32> to vector<8x16xf32>
    %42 = vector.extract_strided_slice %34 {offsets = [0, 16], sizes = [8, 16], strides = [1, 1]} : vector<8x32xf32> to vector<8x16xf32>
    %43 = vector.shape_cast %41 : vector<8x16xf32> to vector<1x8x16xf32>
    %44 = vector.shape_cast %42 : vector<8x16xf32> to vector<1x8x16xf32>
    %45 = tpu.concatenate %43, %44 in 0 : vector<1x8x16xf32>, vector<1x8x16xf32> -> vector<2x8x16xf32>
    %46 = vector.extract_strided_slice %35 {offsets = [0, 0], sizes = [8, 16], strides = [1, 1]} : vector<8x32xf32> to vector<8x16xf32>
    %47 = vector.extract_strided_slice %35 {offsets = [0, 16], sizes = [8, 16], strides = [1, 1]} : vector<8x32xf32> to vector<8x16xf32>
    %48 = vector.shape_cast %46 : vector<8x16xf32> to vector<1x8x16xf32>
    %49 = vector.shape_cast %47 : vector<8x16xf32> to vector<1x8x16xf32>
    %50 = tpu.concatenate %48, %49 in 0 : vector<1x8x16xf32>, vector<1x8x16xf32> -> vector<2x8x16xf32>
    "tpu.trace_start"() <{level = 10 : i32, message = "hqd,hkd->hqk"}> : () -> ()
    %cst_14 = arith.constant dense<0.000000e+00> : vector<2x8x8xf32>
    %51 = tpu.matmul %40, %45, %cst_14 {dimension_numbers = #tpu.dot_dimension_numbers<[2], [2], [1], [1], [0, 0, 0, 1, 1, 1], [0], [0]>} : vector<2x8x16xf32>, vector<2x8x16xf32>, vector<2x8x8xf32> -> vector<2x8x8xf32>
    "tpu.trace_stop"() : () -> ()
    %cst_15 = arith.constant 2.500000e-01 : f32
    %52 = vector.broadcast %cst_15 : f32 to vector<2x8x8xf32>
    %53 = arith.mulf %51, %52 : vector<2x8x8xf32>
    %c0_16 = arith.constant 0 : index
    %c0_17 = arith.constant 0 : index
    %c0_18 = arith.constant 0 : index
    %54 = vector.load %arg3[%c0_16, %c0_17, %c0_18] : memref<1x1x8xf32, #tpu.memory_space<vmem>>, vector<1x1x8xf32>
    %55 = vector.shape_cast %54 : vector<1x1x8xf32> to vector<1x8xf32>
    %56 = vector.shape_cast %55 : vector<1x8xf32> to vector<1x1x8xf32>
    %57 = vector.broadcast %56 : vector<1x1x8xf32> to vector<2x8x8xf32>
    %58 = arith.addf %53, %57 : vector<2x8x8xf32>
    %cst_19 = arith.constant dense<0xFF800000> : vector<2x8xf32>
    %59 = vector.multi_reduction <maximumf>, %58, %cst_19 [2] : vector<2x8x8xf32> to vector<2x8xf32>
    %60 = vector.shape_cast %59 : vector<2x8xf32> to vector<2x8x1xf32>
    %61 = vector.broadcast %60 : vector<2x8x1xf32> to vector<2x8x8xf32>
    %62 = arith.subf %58, %61 : vector<2x8x8xf32>
    %63 = math.exp %62 : vector<2x8x8xf32>
    %cst_20 = arith.constant dense<0.000000e+00> : vector<2x8xf32>
    %64 = vector.multi_reduction <add>, %63, %cst_20 [2] : vector<2x8x8xf32> to vector<2x8xf32>
    %65 = vector.shape_cast %64 : vector<2x8xf32> to vector<2x8x1xf32>
    %66 = vector.broadcast %65 : vector<2x8x1xf32> to vector<2x8x8xf32>
    %67 = arith.divf %63, %66 : vector<2x8x8xf32>
    "tpu.trace_start"() <{level = 10 : i32, message = "hqk,hkd->hqd"}> : () -> ()
    %cst_21 = arith.constant dense<0.000000e+00> : vector<2x8x16xf32>
    %68 = tpu.matmul %67, %50, %cst_21 {dimension_numbers = #tpu.dot_dimension_numbers<[2], [1], [1], [2], [0, 0, 0, 1, 1, 2], [0], [0]>} : vector<2x8x8xf32>, vector<2x8x16xf32>, vector<2x8x16xf32> -> vector<2x8x16xf32>
    "tpu.trace_stop"() : () -> ()
    %69 = vector.extract_strided_slice %68 {offsets = [0, 0, 0], sizes = [1, 8, 16], strides = [1, 1, 1]} : vector<2x8x16xf32> to vector<1x8x16xf32>
    %70 = vector.shape_cast %69 : vector<1x8x16xf32> to vector<8x16xf32>
    %71 = vector.extract_strided_slice %68 {offsets = [1, 0, 0], sizes = [1, 8, 16], strides = [1, 1, 1]} : vector<2x8x16xf32> to vector<1x8x16xf32>
    %72 = vector.shape_cast %71 : vector<1x8x16xf32> to vector<8x16xf32>
    %73 = tpu.concatenate %70, %72 in 1 : vector<8x16xf32>, vector<8x16xf32> -> vector<8x32xf32>
    %74 = arith.index_cast %c0_i32 : i32 to index
    %c0_22 = arith.constant 0 : index
    %c0_23 = arith.constant 0 : index
    %75 = vector.load %arg7[%74, %c0_22, %c0_23] : memref<2x32x32xf32, #tpu.memory_space<vmem>>, vector<1x32x32xf32>
    %76 = vector.shape_cast %75 : vector<1x32x32xf32> to vector<32x32xf32>
    %cst_24 = arith.constant dense<0.000000e+00> : vector<8x32xf32>
    %77 = tpu.matmul %73, %76, %cst_24 {dimension_numbers = #tpu.dot_dimension_numbers<[1], [0], [0], [1], [0, 0, 1, 1], [], []>} : vector<8x32xf32>, vector<32x32xf32>, vector<8x32xf32> -> vector<8x32xf32>
    %78 = arith.index_cast %c0_i32 : i32 to index
    %c0_25 = arith.constant 0 : index
    %c0_26 = arith.constant 0 : index
    %79 = vector.load %arg8[%78, %c0_25, %c0_26] : memref<2x1x32xf32, #tpu.memory_space<vmem>>, vector<1x1x32xf32>
    %80 = vector.shape_cast %79 : vector<1x1x32xf32> to vector<1x32xf32>
    %81 = vector.broadcast %80 : vector<1x32xf32> to vector<8x32xf32>
    %82 = arith.addf %77, %81 : vector<8x32xf32>
    %83 = arith.index_cast %c0_i32 : i32 to index
    %c0_27 = arith.constant 0 : index
    %c0_28 = arith.constant 0 : index
    %84 = vector.load %arg9[%83, %c0_27, %c0_28] : memref<2x4x32xf32, #tpu.memory_space<vmem>>, vector<1x4x32xf32>
    %85 = vector.shape_cast %84 : vector<1x4x32xf32> to vector<4x32xf32>
    %86 = arith.addf %23, %82 : vector<8x32xf32>
    %87 = vector.extract_strided_slice %85 {offsets = [0, 0], sizes = [1, 32], strides = [1, 1]} : vector<4x32xf32> to vector<1x32xf32>
    %88 = vector.extract_strided_slice %85 {offsets = [1, 0], sizes = [1, 32], strides = [1, 1]} : vector<4x32xf32> to vector<1x32xf32>
    %cst_29 = arith.constant dense<0.000000e+00> : vector<8xf32>
    %89 = vector.multi_reduction <add>, %86, %cst_29 [1] : vector<8x32xf32> to vector<8xf32>
    %90 = vector.shape_cast %89 : vector<8xf32> to vector<8x1xf32>
    %cst_30 = arith.constant 3.200000e+01 : f32
    %91 = vector.broadcast %cst_30 : f32 to vector<8x1xf32>
    %92 = arith.divf %90, %91 : vector<8x1xf32>
    %93 = vector.broadcast %92 : vector<8x1xf32> to vector<8x32xf32>
    %94 = arith.subf %86, %93 : vector<8x32xf32>
    %95 = arith.mulf %94, %94 : vector<8x32xf32>
    %cst_31 = arith.constant dense<0.000000e+00> : vector<8xf32>
    %96 = vector.multi_reduction <add>, %95, %cst_31 [1] : vector<8x32xf32> to vector<8xf32>
    %97 = vector.shape_cast %96 : vector<8xf32> to vector<8x1xf32>
    %cst_32 = arith.constant 3.200000e+01 : f32
    %98 = vector.broadcast %cst_32 : f32 to vector<8x1xf32>
    %99 = arith.divf %97, %98 : vector<8x1xf32>
    %cst_33 = arith.constant 9.99999996E-13 : f32
    %100 = vector.broadcast %cst_33 : f32 to vector<8x1xf32>
    %101 = arith.addf %99, %100 : vector<8x1xf32>
    %102 = math.rsqrt %101 : vector<8x1xf32>
    %103 = vector.broadcast %102 : vector<8x1xf32> to vector<8x32xf32>
    %104 = arith.mulf %94, %103 : vector<8x32xf32>
    %105 = vector.broadcast %87 : vector<1x32xf32> to vector<8x32xf32>
    %106 = arith.mulf %104, %105 : vector<8x32xf32>
    %107 = vector.broadcast %88 : vector<1x32xf32> to vector<8x32xf32>
    %108 = arith.addf %106, %107 : vector<8x32xf32>
    %109 = arith.index_cast %c0_i32 : i32 to index
    %c0_34 = arith.constant 0 : index
    %c0_35 = arith.constant 0 : index
    %110 = vector.load %arg10[%109, %c0_34, %c0_35] : memref<2x32x64xf32, #tpu.memory_space<vmem>>, vector<1x32x64xf32>
    %111 = vector.shape_cast %110 : vector<1x32x64xf32> to vector<32x64xf32>
    %cst_36 = arith.constant dense<0.000000e+00> : vector<8x64xf32>
    %112 = tpu.matmul %108, %111, %cst_36 {dimension_numbers = #tpu.dot_dimension_numbers<[1], [0], [0], [1], [0, 0, 1, 1], [], []>} : vector<8x32xf32>, vector<32x64xf32>, vector<8x64xf32> -> vector<8x64xf32>
    %113 = arith.index_cast %c0_i32 : i32 to index
    %c0_37 = arith.constant 0 : index
    %c0_38 = arith.constant 0 : index
    %114 = vector.load %arg11[%113, %c0_37, %c0_38] : memref<2x1x64xf32, #tpu.memory_space<vmem>>, vector<1x1x64xf32>
    %115 = vector.shape_cast %114 : vector<1x1x64xf32> to vector<1x64xf32>
    %116 = vector.broadcast %115 : vector<1x64xf32> to vector<8x64xf32>
    %117 = arith.addf %112, %116 : vector<8x64xf32>
    %118 = arith.mulf %117, %117 : vector<8x64xf32>
    %119 = arith.mulf %117, %118 : vector<8x64xf32>
    %cst_39 = arith.constant 4.471500e-02 : f32
    %120 = vector.broadcast %cst_39 : f32 to vector<8x64xf32>
    %121 = arith.mulf %120, %119 : vector<8x64xf32>
    %122 = arith.addf %117, %121 : vector<8x64xf32>
    %cst_40 = arith.constant 0.797884583 : f32
    %123 = vector.broadcast %cst_40 : f32 to vector<8x64xf32>
    %124 = arith.mulf %123, %122 : vector<8x64xf32>
    %125 = math.tanh %124 : vector<8x64xf32>
    %cst_41 = arith.constant 1.000000e+00 : f32
    %126 = vector.broadcast %cst_41 : f32 to vector<8x64xf32>
    %127 = arith.addf %126, %125 : vector<8x64xf32>
    %cst_42 = arith.constant 5.000000e-01 : f32
    %128 = vector.broadcast %cst_42 : f32 to vector<8x64xf32>
    %129 = arith.mulf %128, %127 : vector<8x64xf32>
    %130 = arith.mulf %117, %129 : vector<8x64xf32>
    %131 = arith.index_cast %c0_i32 : i32 to index
    %c0_43 = arith.constant 0 : index
    %c0_44 = arith.constant 0 : index
    %132 = vector.load %arg12[%131, %c0_43, %c0_44] : memref<2x64x32xf32, #tpu.memory_space<vmem>>, vector<1x64x32xf32>
    %133 = vector.shape_cast %132 : vector<1x64x32xf32> to vector<64x32xf32>
    %cst_45 = arith.constant dense<0.000000e+00> : vector<8x32xf32>
    %134 = tpu.matmul %130, %133, %cst_45 {dimension_numbers = #tpu.dot_dimension_numbers<[1], [0], [0], [1], [0, 0, 1, 1], [], []>} : vector<8x64xf32>, vector<64x32xf32>, vector<8x32xf32> -> vector<8x32xf32>
    %135 = arith.index_cast %c0_i32 : i32 to index
    %c0_46 = arith.constant 0 : index
    %c0_47 = arith.constant 0 : index
    %136 = vector.load %arg13[%135, %c0_46, %c0_47] : memref<2x1x32xf32, #tpu.memory_space<vmem>>, vector<1x1x32xf32>
    %137 = vector.shape_cast %136 : vector<1x1x32xf32> to vector<1x32xf32>
    %138 = vector.broadcast %137 : vector<1x32xf32> to vector<8x32xf32>
    %139 = arith.addf %134, %138 : vector<8x32xf32>
    %140 = arith.addf %108, %139 : vector<8x32xf32>
    %141 = vector.extract_strided_slice %85 {offsets = [2, 0], sizes = [1, 32], strides = [1, 1]} : vector<4x32xf32> to vector<1x32xf32>
    %142 = vector.extract_strided_slice %85 {offsets = [3, 0], sizes = [1, 32], strides = [1, 1]} : vector<4x32xf32> to vector<1x32xf32>
    %cst_48 = arith.constant dense<0.000000e+00> : vector<8xf32>
    %143 = vector.multi_reduction <add>, %140, %cst_48 [1] : vector<8x32xf32> to vector<8xf32>
    %144 = vector.shape_cast %143 : vector<8xf32> to vector<8x1xf32>
    %cst_49 = arith.constant 3.200000e+01 : f32
    %145 = vector.broadcast %cst_49 : f32 to vector<8x1xf32>
    %146 = arith.divf %144, %145 : vector<8x1xf32>
    %147 = vector.broadcast %146 : vector<8x1xf32> to vector<8x32xf32>
    %148 = arith.subf %140, %147 : vector<8x32xf32>
    %149 = arith.mulf %148, %148 : vector<8x32xf32>
    %cst_50 = arith.constant dense<0.000000e+00> : vector<8xf32>
    %150 = vector.multi_reduction <add>, %149, %cst_50 [1] : vector<8x32xf32> to vector<8xf32>
    %151 = vector.shape_cast %150 : vector<8xf32> to vector<8x1xf32>
    %cst_51 = arith.constant 3.200000e+01 : f32
    %152 = vector.broadcast %cst_51 : f32 to vector<8x1xf32>
    %153 = arith.divf %151, %152 : vector<8x1xf32>
    %cst_52 = arith.constant 9.99999996E-13 : f32
    %154 = vector.broadcast %cst_52 : f32 to vector<8x1xf32>
    %155 = arith.addf %153, %154 : vector<8x1xf32>
    %156 = math.rsqrt %155 : vector<8x1xf32>
    %157 = vector.broadcast %156 : vector<8x1xf32> to vector<8x32xf32>
    %158 = arith.mulf %148, %157 : vector<8x32xf32>
    %159 = vector.broadcast %141 : vector<1x32xf32> to vector<8x32xf32>
    %160 = arith.mulf %158, %159 : vector<8x32xf32>
    %161 = vector.broadcast %142 : vector<1x32xf32> to vector<8x32xf32>
    %162 = arith.addf %160, %161 : vector<8x32xf32>
    %c1_i32 = arith.constant 1 : i32
    %163 = arith.index_cast %c1_i32 : i32 to index
    %c0_53 = arith.constant 0 : index
    %c0_54 = arith.constant 0 : index
    %164 = vector.load %arg5[%163, %c0_53, %c0_54] : memref<2x32x96xf32, #tpu.memory_space<vmem>>, vector<1x32x96xf32>
    %165 = vector.shape_cast %164 : vector<1x32x96xf32> to vector<32x96xf32>
    %cst_55 = arith.constant dense<0.000000e+00> : vector<8x96xf32>
    %166 = tpu.matmul %162, %165, %cst_55 {dimension_numbers = #tpu.dot_dimension_numbers<[1], [0], [0], [1], [0, 0, 1, 1], [], []>} : vector<8x32xf32>, vector<32x96xf32>, vector<8x96xf32> -> vector<8x96xf32>
    %167 = arith.index_cast %c1_i32 : i32 to index
    %c0_56 = arith.constant 0 : index
    %c0_57 = arith.constant 0 : index
    %168 = vector.load %arg6[%167, %c0_56, %c0_57] : memref<2x1x96xf32, #tpu.memory_space<vmem>>, vector<1x1x96xf32>
    %169 = vector.shape_cast %168 : vector<1x1x96xf32> to vector<1x96xf32>
    %170 = vector.broadcast %169 : vector<1x96xf32> to vector<8x96xf32>
    %171 = arith.addf %166, %170 : vector<8x96xf32>
    %172 = vector.extract_strided_slice %171 {offsets = [0, 0], sizes = [8, 32], strides = [1, 1]} : vector<8x96xf32> to vector<8x32xf32>
    %173 = vector.extract_strided_slice %171 {offsets = [0, 32], sizes = [8, 32], strides = [1, 1]} : vector<8x96xf32> to vector<8x32xf32>
    %174 = vector.extract_strided_slice %171 {offsets = [0, 64], sizes = [8, 32], strides = [1, 1]} : vector<8x96xf32> to vector<8x32xf32>
    %175 = vector.extract_strided_slice %172 {offsets = [0, 0], sizes = [8, 16], strides = [1, 1]} : vector<8x32xf32> to vector<8x16xf32>
    %176 = vector.extract_strided_slice %172 {offsets = [0, 16], sizes = [8, 16], strides = [1, 1]} : vector<8x32xf32> to vector<8x16xf32>
    %177 = vector.shape_cast %175 : vector<8x16xf32> to vector<1x8x16xf32>
    %178 = vector.shape_cast %176 : vector<8x16xf32> to vector<1x8x16xf32>
    %179 = tpu.concatenate %177, %178 in 0 : vector<1x8x16xf32>, vector<1x8x16xf32> -> vector<2x8x16xf32>
    %180 = vector.extract_strided_slice %173 {offsets = [0, 0], sizes = [8, 16], strides = [1, 1]} : vector<8x32xf32> to vector<8x16xf32>
    %181 = vector.extract_strided_slice %173 {offsets = [0, 16], sizes = [8, 16], strides = [1, 1]} : vector<8x32xf32> to vector<8x16xf32>
    %182 = vector.shape_cast %180 : vector<8x16xf32> to vector<1x8x16xf32>
    %183 = vector.shape_cast %181 : vector<8x16xf32> to vector<1x8x16xf32>
    %184 = tpu.concatenate %182, %183 in 0 : vector<1x8x16xf32>, vector<1x8x16xf32> -> vector<2x8x16xf32>
    %185 = vector.extract_strided_slice %174 {offsets = [0, 0], sizes = [8, 16], strides = [1, 1]} : vector<8x32xf32> to vector<8x16xf32>
    %186 = vector.extract_strided_slice %174 {offsets = [0, 16], sizes = [8, 16], strides = [1, 1]} : vector<8x32xf32> to vector<8x16xf32>
    %187 = vector.shape_cast %185 : vector<8x16xf32> to vector<1x8x16xf32>
    %188 = vector.shape_cast %186 : vector<8x16xf32> to vector<1x8x16xf32>
    %189 = tpu.concatenate %187, %188 in 0 : vector<1x8x16xf32>, vector<1x8x16xf32> -> vector<2x8x16xf32>
    "tpu.trace_start"() <{level = 10 : i32, message = "hqd,hkd->hqk"}> : () -> ()
    %cst_58 = arith.constant dense<0.000000e+00> : vector<2x8x8xf32>
    %190 = tpu.matmul %179, %184, %cst_58 {dimension_numbers = #tpu.dot_dimension_numbers<[2], [2], [1], [1], [0, 0, 0, 1, 1, 1], [0], [0]>} : vector<2x8x16xf32>, vector<2x8x16xf32>, vector<2x8x8xf32> -> vector<2x8x8xf32>
    "tpu.trace_stop"() : () -> ()
    %cst_59 = arith.constant 2.500000e-01 : f32
    %191 = vector.broadcast %cst_59 : f32 to vector<2x8x8xf32>
    %192 = arith.mulf %190, %191 : vector<2x8x8xf32>
    %c0_60 = arith.constant 0 : index
    %c0_61 = arith.constant 0 : index
    %c0_62 = arith.constant 0 : index
    %193 = vector.load %arg3[%c0_60, %c0_61, %c0_62] : memref<1x1x8xf32, #tpu.memory_space<vmem>>, vector<1x1x8xf32>
    %194 = vector.shape_cast %193 : vector<1x1x8xf32> to vector<1x8xf32>
    %195 = vector.shape_cast %194 : vector<1x8xf32> to vector<1x1x8xf32>
    %196 = vector.broadcast %195 : vector<1x1x8xf32> to vector<2x8x8xf32>
    %197 = arith.addf %192, %196 : vector<2x8x8xf32>
    %cst_63 = arith.constant dense<0xFF800000> : vector<2x8xf32>
    %198 = vector.multi_reduction <maximumf>, %197, %cst_63 [2] : vector<2x8x8xf32> to vector<2x8xf32>
    %199 = vector.shape_cast %198 : vector<2x8xf32> to vector<2x8x1xf32>
    %200 = vector.broadcast %199 : vector<2x8x1xf32> to vector<2x8x8xf32>
    %201 = arith.subf %197, %200 : vector<2x8x8xf32>
    %202 = math.exp %201 : vector<2x8x8xf32>
    %cst_64 = arith.constant dense<0.000000e+00> : vector<2x8xf32>
    %203 = vector.multi_reduction <add>, %202, %cst_64 [2] : vector<2x8x8xf32> to vector<2x8xf32>
    %204 = vector.shape_cast %203 : vector<2x8xf32> to vector<2x8x1xf32>
    %205 = vector.broadcast %204 : vector<2x8x1xf32> to vector<2x8x8xf32>
    %206 = arith.divf %202, %205 : vector<2x8x8xf32>
    "tpu.trace_start"() <{level = 10 : i32, message = "hqk,hkd->hqd"}> : () -> ()
    %cst_65 = arith.constant dense<0.000000e+00> : vector<2x8x16xf32>
    %207 = tpu.matmul %206, %189, %cst_65 {dimension_numbers = #tpu.dot_dimension_numbers<[2], [1], [1], [2], [0, 0, 0, 1, 1, 2], [0], [0]>} : vector<2x8x8xf32>, vector<2x8x16xf32>, vector<2x8x16xf32> -> vector<2x8x16xf32>
    "tpu.trace_stop"() : () -> ()
    %208 = vector.extract_strided_slice %207 {offsets = [0, 0, 0], sizes = [1, 8, 16], strides = [1, 1, 1]} : vector<2x8x16xf32> to vector<1x8x16xf32>
    %209 = vector.shape_cast %208 : vector<1x8x16xf32> to vector<8x16xf32>
    %210 = vector.extract_strided_slice %207 {offsets = [1, 0, 0], sizes = [1, 8, 16], strides = [1, 1, 1]} : vector<2x8x16xf32> to vector<1x8x16xf32>
    %211 = vector.shape_cast %210 : vector<1x8x16xf32> to vector<8x16xf32>
    %212 = tpu.concatenate %209, %211 in 1 : vector<8x16xf32>, vector<8x16xf32> -> vector<8x32xf32>
    %213 = arith.index_cast %c1_i32 : i32 to index
    %c0_66 = arith.constant 0 : index
    %c0_67 = arith.constant 0 : index
    %214 = vector.load %arg7[%213, %c0_66, %c0_67] : memref<2x32x32xf32, #tpu.memory_space<vmem>>, vector<1x32x32xf32>
    %215 = vector.shape_cast %214 : vector<1x32x32xf32> to vector<32x32xf32>
    %cst_68 = arith.constant dense<0.000000e+00> : vector<8x32xf32>
    %216 = tpu.matmul %212, %215, %cst_68 {dimension_numbers = #tpu.dot_dimension_numbers<[1], [0], [0], [1], [0, 0, 1, 1], [], []>} : vector<8x32xf32>, vector<32x32xf32>, vector<8x32xf32> -> vector<8x32xf32>
    %217 = arith.index_cast %c1_i32 : i32 to index
    %c0_69 = arith.constant 0 : index
    %c0_70 = arith.constant 0 : index
    %218 = vector.load %arg8[%217, %c0_69, %c0_70] : memref<2x1x32xf32, #tpu.memory_space<vmem>>, vector<1x1x32xf32>
    %219 = vector.shape_cast %218 : vector<1x1x32xf32> to vector<1x32xf32>
    %220 = vector.broadcast %219 : vector<1x32xf32> to vector<8x32xf32>
    %221 = arith.addf %216, %220 : vector<8x32xf32>
    %222 = arith.index_cast %c1_i32 : i32 to index
    %c0_71 = arith.constant 0 : index
    %c0_72 = arith.constant 0 : index
    %223 = vector.load %arg9[%222, %c0_71, %c0_72] : memref<2x4x32xf32, #tpu.memory_space<vmem>>, vector<1x4x32xf32>
    %224 = vector.shape_cast %223 : vector<1x4x32xf32> to vector<4x32xf32>
    %225 = arith.addf %162, %221 : vector<8x32xf32>
    %226 = vector.extract_strided_slice %224 {offsets = [0, 0], sizes = [1, 32], strides = [1, 1]} : vector<4x32xf32> to vector<1x32xf32>
    %227 = vector.extract_strided_slice %224 {offsets = [1, 0], sizes = [1, 32], strides = [1, 1]} : vector<4x32xf32> to vector<1x32xf32>
    %cst_73 = arith.constant dense<0.000000e+00> : vector<8xf32>
    %228 = vector.multi_reduction <add>, %225, %cst_73 [1] : vector<8x32xf32> to vector<8xf32>
    %229 = vector.shape_cast %228 : vector<8xf32> to vector<8x1xf32>
    %cst_74 = arith.constant 3.200000e+01 : f32
    %230 = vector.broadcast %cst_74 : f32 to vector<8x1xf32>
    %231 = arith.divf %229, %230 : vector<8x1xf32>
    %232 = vector.broadcast %231 : vector<8x1xf32> to vector<8x32xf32>
    %233 = arith.subf %225, %232 : vector<8x32xf32>
    %234 = arith.mulf %233, %233 : vector<8x32xf32>
    %cst_75 = arith.constant dense<0.000000e+00> : vector<8xf32>
    %235 = vector.multi_reduction <add>, %234, %cst_75 [1] : vector<8x32xf32> to vector<8xf32>
    %236 = vector.shape_cast %235 : vector<8xf32> to vector<8x1xf32>
    %cst_76 = arith.constant 3.200000e+01 : f32
    %237 = vector.broadcast %cst_76 : f32 to vector<8x1xf32>
    %238 = arith.divf %236, %237 : vector<8x1xf32>
    %cst_77 = arith.constant 9.99999996E-13 : f32
    %239 = vector.broadcast %cst_77 : f32 to vector<8x1xf32>
    %240 = arith.addf %238, %239 : vector<8x1xf32>
    %241 = math.rsqrt %240 : vector<8x1xf32>
    %242 = vector.broadcast %241 : vector<8x1xf32> to vector<8x32xf32>
    %243 = arith.mulf %233, %242 : vector<8x32xf32>
    %244 = vector.broadcast %226 : vector<1x32xf32> to vector<8x32xf32>
    %245 = arith.mulf %243, %244 : vector<8x32xf32>
    %246 = vector.broadcast %227 : vector<1x32xf32> to vector<8x32xf32>
    %247 = arith.addf %245, %246 : vector<8x32xf32>
    %248 = arith.index_cast %c1_i32 : i32 to index
    %c0_78 = arith.constant 0 : index
    %c0_79 = arith.constant 0 : index
    %249 = vector.load %arg10[%248, %c0_78, %c0_79] : memref<2x32x64xf32, #tpu.memory_space<vmem>>, vector<1x32x64xf32>
    %250 = vector.shape_cast %249 : vector<1x32x64xf32> to vector<32x64xf32>
    %cst_80 = arith.constant dense<0.000000e+00> : vector<8x64xf32>
    %251 = tpu.matmul %247, %250, %cst_80 {dimension_numbers = #tpu.dot_dimension_numbers<[1], [0], [0], [1], [0, 0, 1, 1], [], []>} : vector<8x32xf32>, vector<32x64xf32>, vector<8x64xf32> -> vector<8x64xf32>
    %252 = arith.index_cast %c1_i32 : i32 to index
    %c0_81 = arith.constant 0 : index
    %c0_82 = arith.constant 0 : index
    %253 = vector.load %arg11[%252, %c0_81, %c0_82] : memref<2x1x64xf32, #tpu.memory_space<vmem>>, vector<1x1x64xf32>
    %254 = vector.shape_cast %253 : vector<1x1x64xf32> to vector<1x64xf32>
    %255 = vector.broadcast %254 : vector<1x64xf32> to vector<8x64xf32>
    %256 = arith.addf %251, %255 : vector<8x64xf32>
    %257 = arith.mulf %256, %256 : vector<8x64xf32>
    %258 = arith.mulf %256, %257 : vector<8x64xf32>
    %cst_83 = arith.constant 4.471500e-02 : f32
    %259 = vector.broadcast %cst_83 : f32 to vector<8x64xf32>
    %260 = arith.mulf %259, %258 : vector<8x64xf32>
    %261 = arith.addf %256, %260 : vector<8x64xf32>
    %cst_84 = arith.constant 0.797884583 : f32
    %262 = vector.broadcast %cst_84 : f32 to vector<8x64xf32>
    %263 = arith.mulf %262, %261 : vector<8x64xf32>
    %264 = math.tanh %263 : vector<8x64xf32>
    %cst_85 = arith.constant 1.000000e+00 : f32
    %265 = vector.broadcast %cst_85 : f32 to vector<8x64xf32>
    %266 = arith.addf %265, %264 : vector<8x64xf32>
    %cst_86 = arith.constant 5.000000e-01 : f32
    %267 = vector.broadcast %cst_86 : f32 to vector<8x64xf32>
    %268 = arith.mulf %267, %266 : vector<8x64xf32>
    %269 = arith.mulf %256, %268 : vector<8x64xf32>
    %270 = arith.index_cast %c1_i32 : i32 to index
    %c0_87 = arith.constant 0 : index
    %c0_88 = arith.constant 0 : index
    %271 = vector.load %arg12[%270, %c0_87, %c0_88] : memref<2x64x32xf32, #tpu.memory_space<vmem>>, vector<1x64x32xf32>
    %272 = vector.shape_cast %271 : vector<1x64x32xf32> to vector<64x32xf32>
    %cst_89 = arith.constant dense<0.000000e+00> : vector<8x32xf32>
    %273 = tpu.matmul %269, %272, %cst_89 {dimension_numbers = #tpu.dot_dimension_numbers<[1], [0], [0], [1], [0, 0, 1, 1], [], []>} : vector<8x64xf32>, vector<64x32xf32>, vector<8x32xf32> -> vector<8x32xf32>
    %274 = arith.index_cast %c1_i32 : i32 to index
    %c0_90 = arith.constant 0 : index
    %c0_91 = arith.constant 0 : index
    %275 = vector.load %arg13[%274, %c0_90, %c0_91] : memref<2x1x32xf32, #tpu.memory_space<vmem>>, vector<1x1x32xf32>
    %276 = vector.shape_cast %275 : vector<1x1x32xf32> to vector<1x32xf32>
    %277 = vector.broadcast %276 : vector<1x32xf32> to vector<8x32xf32>
    %278 = arith.addf %273, %277 : vector<8x32xf32>
    %279 = arith.addf %247, %278 : vector<8x32xf32>
    %280 = vector.extract_strided_slice %224 {offsets = [2, 0], sizes = [1, 32], strides = [1, 1]} : vector<4x32xf32> to vector<1x32xf32>
    %281 = vector.extract_strided_slice %224 {offsets = [3, 0], sizes = [1, 32], strides = [1, 1]} : vector<4x32xf32> to vector<1x32xf32>
    %cst_92 = arith.constant dense<0.000000e+00> : vector<8xf32>
    %282 = vector.multi_reduction <add>, %279, %cst_92 [1] : vector<8x32xf32> to vector<8xf32>
    %283 = vector.shape_cast %282 : vector<8xf32> to vector<8x1xf32>
    %cst_93 = arith.constant 3.200000e+01 : f32
    %284 = vector.broadcast %cst_93 : f32 to vector<8x1xf32>
    %285 = arith.divf %283, %284 : vector<8x1xf32>
    %286 = vector.broadcast %285 : vector<8x1xf32> to vector<8x32xf32>
    %287 = arith.subf %279, %286 : vector<8x32xf32>
    %288 = arith.mulf %287, %287 : vector<8x32xf32>
    %cst_94 = arith.constant dense<0.000000e+00> : vector<8xf32>
    %289 = vector.multi_reduction <add>, %288, %cst_94 [1] : vector<8x32xf32> to vector<8xf32>
    %290 = vector.shape_cast %289 : vector<8xf32> to vector<8x1xf32>
    %cst_95 = arith.constant 3.200000e+01 : f32
    %291 = vector.broadcast %cst_95 : f32 to vector<8x1xf32>
    %292 = arith.divf %290, %291 : vector<8x1xf32>
    %cst_96 = arith.constant 9.99999996E-13 : f32
    %293 = vector.broadcast %cst_96 : f32 to vector<8x1xf32>
    %294 = arith.addf %292, %293 : vector<8x1xf32>
    %295 = math.rsqrt %294 : vector<8x1xf32>
    %296 = vector.broadcast %295 : vector<8x1xf32> to vector<8x32xf32>
    %297 = arith.mulf %287, %296 : vector<8x32xf32>
    %298 = vector.broadcast %280 : vector<1x32xf32> to vector<8x32xf32>
    %299 = arith.mulf %297, %298 : vector<8x32xf32>
    %300 = vector.broadcast %281 : vector<1x32xf32> to vector<8x32xf32>
    %301 = arith.addf %299, %300 : vector<8x32xf32>
    %c2_i32 = arith.constant 2 : i32
    %302 = tpu.iota {dimensions = array<i32: 1>} : vector<3x8xi32>
    %303 = tpu.iota {dimensions = array<i32: 0>} : vector<3x8xi32>
    %c1_i32_97 = arith.constant 1 : i32
    %304 = arith.muli %arg0, %c1_i32_97 : i32
    %c0_i32_98 = arith.constant 0 : i32
    %305 = arith.addi %304, %c0_i32_98 : i32
    %c3_i32 = arith.constant 3 : i32
    %306 = arith.muli %305, %c3_i32 : i32
    %cst_99 = arith.constant 0.000000e+00 : f32
    %307 = vector.broadcast %cst_99 : f32 to vector<3x8xf32>
    %c0_i32_100 = arith.constant 0 : i32
    %308 = arith.addi %306, %c0_i32_100 : i32
    %309 = arith.index_cast %308 : i32 to index
    %310 = memref.load %arg1[%309] : memref<6xi32, #tpu.memory_space<smem>>
    %c0_i32_101 = arith.constant 0 : i32
    %c7_i32 = arith.constant 7 : i32
    %311 = arith.maxsi %c0_i32_101, %310 : i32
    %312 = arith.minsi %c7_i32, %311 : i32
    %c0_i32_102 = arith.constant 0 : i32
    %313 = vector.broadcast %c0_i32_102 : i32 to vector<3x8xi32>
    %314 = arith.cmpi eq, %303, %313 : vector<3x8xi32>
    %315 = vector.broadcast %312 : i32 to vector<3x8xi32>
    %316 = arith.cmpi eq, %302, %315 : vector<3x8xi32>
    %317 = arith.andi %314, %316 : vector<3x8xi1>
    %cst_103 = arith.constant 1.000000e+00 : f32
    %318 = vector.broadcast %cst_103 : f32 to vector<3x8xf32>
    %319 = arith.select %317, %318, %307 : vector<3x8xi1>, vector<3x8xf32>
    %c1_i32_104 = arith.constant 1 : i32
    %320 = arith.addi %306, %c1_i32_104 : i32
    %321 = arith.index_cast %320 : i32 to index
    %322 = memref.load %arg1[%321] : memref<6xi32, #tpu.memory_space<smem>>
    %c0_i32_105 = arith.constant 0 : i32
    %c7_i32_106 = arith.constant 7 : i32
    %323 = arith.maxsi %c0_i32_105, %322 : i32
    %324 = arith.minsi %c7_i32_106, %323 : i32
    %c1_i32_107 = arith.constant 1 : i32
    %325 = vector.broadcast %c1_i32_107 : i32 to vector<3x8xi32>
    %326 = arith.cmpi eq, %303, %325 : vector<3x8xi32>
    %327 = vector.broadcast %324 : i32 to vector<3x8xi32>
    %328 = arith.cmpi eq, %302, %327 : vector<3x8xi32>
    %329 = arith.andi %326, %328 : vector<3x8xi1>
    %cst_108 = arith.constant 1.000000e+00 : f32
    %330 = vector.broadcast %cst_108 : f32 to vector<3x8xf32>
    %331 = arith.select %329, %330, %319 : vector<3x8xi1>, vector<3x8xf32>
    %c2_i32_109 = arith.constant 2 : i32
    %332 = arith.addi %306, %c2_i32_109 : i32
    %333 = arith.index_cast %332 : i32 to index
    %334 = memref.load %arg1[%333] : memref<6xi32, #tpu.memory_space<smem>>
    %c0_i32_110 = arith.constant 0 : i32
    %c7_i32_111 = arith.constant 7 : i32
    %335 = arith.maxsi %c0_i32_110, %334 : i32
    %336 = arith.minsi %c7_i32_111, %335 : i32
    %c2_i32_112 = arith.constant 2 : i32
    %337 = vector.broadcast %c2_i32_112 : i32 to vector<3x8xi32>
    %338 = arith.cmpi eq, %303, %337 : vector<3x8xi32>
    %339 = vector.broadcast %336 : i32 to vector<3x8xi32>
    %340 = arith.cmpi eq, %302, %339 : vector<3x8xi32>
    %341 = arith.andi %338, %340 : vector<3x8xi1>
    %cst_113 = arith.constant 1.000000e+00 : f32
    %342 = vector.broadcast %cst_113 : f32 to vector<3x8xf32>
    %343 = arith.select %341, %342, %331 : vector<3x8xi1>, vector<3x8xf32>
    %cst_114 = arith.constant dense<0.000000e+00> : vector<3x32xf32>
    %344 = tpu.matmul %343, %301, %cst_114 {dimension_numbers = #tpu.dot_dimension_numbers<[1], [0], [0], [1], [0, 0, 1, 1], [], []>} : vector<3x8xf32>, vector<8x32xf32>, vector<3x32xf32> -> vector<3x32xf32>
    %c0_115 = arith.constant 0 : index
    %c0_116 = arith.constant 0 : index
    %c0_117 = arith.constant 0 : index
    %345 = vector.load %arg14[%c0_115, %c0_116, %c0_117] : memref<1x3x32xf32, #tpu.memory_space<vmem>>, vector<1x3x32xf32>
    %346 = vector.shape_cast %345 : vector<1x3x32xf32> to vector<3x32xf32>
    %347 = vector.shape_cast %344 : vector<3x32xf32> to vector<1x3x32xf32>
    tpu.vector_store %arg14[%c0_115, %c0_116, %c0_117], %347 {strides = array<i32>} : memref<1x3x32xf32, #tpu.memory_space<vmem>>, vector<1x3x32xf32>,
    return
  }
  func.func @transform_0(%arg0: i32, %arg1: memref<6xi32, #tpu.memory_space<smem>>) -> (i32, i32, i32) {
    %c0_i32 = arith.constant 0 : i32
    %c0_i32_0 = arith.constant 0 : i32
    %c0_i32_1 = arith.constant 0 : i32
    return %arg0, %c0_i32, %c0_i32_0 : i32, i32, i32
  }
  func.func @transform_1(%arg0: i32, %arg1: memref<6xi32, #tpu.memory_space<smem>>) -> (i32, i32, i32) {
    %c0_i32 = arith.constant 0 : i32
    %c0_i32_0 = arith.constant 0 : i32
    %c0_i32_1 = arith.constant 0 : i32
    return %arg0, %c0_i32, %c0_i32_0 : i32, i32, i32
  }
  func.func @transform_2(%arg0: i32, %arg1: memref<6xi32, #tpu.memory_space<smem>>) -> (i32, i32) {
    %c0_i32 = arith.constant 0 : i32
    %c0_i32_0 = arith.constant 0 : i32
    %c0_i32_1 = arith.constant 0 : i32
    return %c0_i32, %c0_i32_0 : i32, i32
  }
  func.func @transform_3(%arg0: i32, %arg1: memref<6xi32, #tpu.memory_space<smem>>) -> (i32, i32, i32) {
    %c0_i32 = arith.constant 0 : i32
    %c0_i32_0 = arith.constant 0 : i32
    %c0_i32_1 = arith.constant 0 : i32
    %c0_i32_2 = arith.constant 0 : i32
    return %c0_i32, %c0_i32_0, %c0_i32_1 : i32, i32, i32
  }
  func.func @transform_4(%arg0: i32, %arg1: memref<6xi32, #tpu.memory_space<smem>>) -> (i32, i32, i32) {
    %c0_i32 = arith.constant 0 : i32
    %c0_i32_0 = arith.constant 0 : i32
    %c0_i32_1 = arith.constant 0 : i32
    %c0_i32_2 = arith.constant 0 : i32
    return %c0_i32, %c0_i32_0, %c0_i32_1 : i32, i32, i32
  }
  func.func @transform_5(%arg0: i32, %arg1: memref<6xi32, #tpu.memory_space<smem>>) -> (i32, i32, i32) {
    %c0_i32 = arith.constant 0 : i32
    %c0_i32_0 = arith.constant 0 : i32
    %c0_i32_1 = arith.constant 0 : i32
    %c0_i32_2 = arith.constant 0 : i32
    return %c0_i32, %c0_i32_0, %c0_i32_1 : i32, i32, i32
  }
  func.func @transform_6(%arg0: i32, %arg1: memref<6xi32, #tpu.memory_space<smem>>) -> (i32, i32, i32) {
    %c0_i32 = arith.constant 0 : i32
    %c0_i32_0 = arith.constant 0 : i32
    %c0_i32_1 = arith.constant 0 : i32
    %c0_i32_2 = arith.constant 0 : i32
    return %c0_i32, %c0_i32_0, %c0_i32_1 : i32, i32, i32
  }
  func.func @transform_7(%arg0: i32, %arg1: memref<6xi32, #tpu.memory_space<smem>>) -> (i32, i32, i32) {
    %c0_i32 = arith.constant 0 : i32
    %c0_i32_0 = arith.constant 0 : i32
    %c0_i32_1 = arith.constant 0 : i32
    %c0_i32_2 = arith.constant 0 : i32
    return %c0_i32, %c0_i32_0, %c0_i32_1 : i32, i32, i32
  }
  func.func @transform_8(%arg0: i32, %arg1: memref<6xi32, #tpu.memory_space<smem>>) -> (i32, i32, i32) {
    %c0_i32 = arith.constant 0 : i32
    %c0_i32_0 = arith.constant 0 : i32
    %c0_i32_1 = arith.constant 0 : i32
    %c0_i32_2 = arith.constant 0 : i32
    return %c0_i32, %c0_i32_0, %c0_i32_1 : i32, i32, i32
  }
  func.func @transform_9(%arg0: i32, %arg1: memref<6xi32, #tpu.memory_space<smem>>) -> (i32, i32, i32) {
    %c0_i32 = arith.constant 0 : i32
    %c0_i32_0 = arith.constant 0 : i32
    %c0_i32_1 = arith.constant 0 : i32
    %c0_i32_2 = arith.constant 0 : i32
    return %c0_i32, %c0_i32_0, %c0_i32_1 : i32, i32, i32
  }
  func.func @transform_10(%arg0: i32, %arg1: memref<6xi32, #tpu.memory_space<smem>>) -> (i32, i32, i32) {
    %c0_i32 = arith.constant 0 : i32
    %c0_i32_0 = arith.constant 0 : i32
    %c0_i32_1 = arith.constant 0 : i32
    %c0_i32_2 = arith.constant 0 : i32
    return %c0_i32, %c0_i32_0, %c0_i32_1 : i32, i32, i32
  }
  func.func @transform_11(%arg0: i32, %arg1: memref<6xi32, #tpu.memory_space<smem>>) -> (i32, i32, i32) {
    %c0_i32 = arith.constant 0 : i32
    %c0_i32_0 = arith.constant 0 : i32
    %c0_i32_1 = arith.constant 0 : i32
    %c0_i32_2 = arith.constant 0 : i32
    return %c0_i32, %c0_i32_0, %c0_i32_1 : i32, i32, i32
  }
  func.func @transform_12(%arg0: i32, %arg1: memref<6xi32, #tpu.memory_space<smem>>) -> (i32, i32, i32) {
    %c0_i32 = arith.constant 0 : i32
    %c0_i32_0 = arith.constant 0 : i32
    %c0_i32_1 = arith.constant 0 : i32
    return %arg0, %c0_i32, %c0_i32_0 : i32, i32, i32
  }
}

</mosaic_0001>

<llo_original>
// kernel: bert_forward.1
$region0: #{bert_forward.1}
  #allocation0 [shape = 'u32[]', space=smem, size = 0x4, offset = 0x4, fixed_abs, tag = 'smem constant byte address 0x4 - core index']
  #allocation1 [shape = 'u32[144,128]{1,0:T(1,128)}', space=vmem, size = 0x12000, scoped, tag = 'internal scratch']
  #allocation2 [shape = 's32[1]{0}', space=sflag, size = 0x4, scoped, tag = 'scoped memory for bert_forward.1']
  #allocation3 [shape = 'u8[512]{0}', space=smem, size = 0x200, scoped, tag = 'prefetched SMEM operand 0']
  %s0 = inlined_call_operand.vmem [shape: s32[6], index: 0, kind: input, shape index: {}]
  %s1 = inlined_call_operand.vmem [shape: f32[2,8,32], index: 1, kind: input, shape index: {}]
  %s2 = inlined_call_operand.vmem [shape: f32[2,1,8], index: 2, kind: input, shape index: {}]
  %s3 = inlined_call_operand.vmem [shape: f32[2,32], index: 3, kind: input, shape index: {}]
  %s4 = inlined_call_operand.vmem [shape: f32[2,32,96], index: 4, kind: input, shape index: {}]
  %s5 = inlined_call_operand.vmem [shape: f32[2,1,96], index: 5, kind: input, shape index: {}]
  %s6 = inlined_call_operand.vmem [shape: f32[2,32,32], index: 6, kind: input, shape index: {}]
  %s7 = inlined_call_operand.vmem [shape: f32[2,1,32], index: 7, kind: input, shape index: {}]
  %s8 = inlined_call_operand.vmem [shape: f32[2,4,32], index: 8, kind: input, shape index: {}]
  %s9 = inlined_call_operand.vmem [shape: f32[2,32,64], index: 9, kind: input, shape index: {}]
  %s10 = inlined_call_operand.vmem [shape: f32[2,1,64], index: 10, kind: input, shape index: {}]
  %s11 = inlined_call_operand.vmem [shape: f32[2,64,32], index: 11, kind: input, shape index: {}]
  %s12 = inlined_call_operand.vmem [shape: f32[2,1,32], index: 12, kind: input, shape index: {}]
  %s13 = inlined_call_operand.vmem [shape: f32[2,3,32], index: 13, kind: output, shape index: {}]
  %s14 = sld [smem:[#allocation0]]
  $region81: #{bert_forward.1} parent=0
    _
  %s16 = ssub.s32 1, %s14
  %s17 = scalar_select 0, %s16, %s14
  %s18 = sshll.u32 %s0, 4
  %s19 = int_to_ptr.vmem [resolvable:$true] %s18
  %21 = dma.vmem_to_smem %s19, 16, [#allocation3], [#allocation2]
  %22 = dma.done [#allocation2], 16
  %23 = sfence
  loop: start=0, step=1, limit=4
  $region2: #{bert_forward.1} parent=0 // loop_pre_header
    _
  $region3: #{bert_forward.1} parent=0 // loop_header
    %s25 = sphi 0, %s29
    %p26 = scmp.ge.s32.totalorder %s25, 4
    %s35 = sphi 0, %s37
    %s38 = sphi 0, %s35
    %s39 = sphi 0, %s38
    %s55 = sphi 0, %s39
    %s61 = sphi 0, %s63
    %s64 = sphi 0, %s61
    %s65 = sphi 0, %s64
    %s81 = sphi 0, %s65
    %s85 = sphi 0, %s85
    %s87 = sphi 0, %s85
    %s88 = sphi 0, %s87
    %s102 = sphi 0, %s88
    %s106 = sphi 0, %s106
    %s108 = sphi 0, %s106
    %s109 = sphi 0, %s108
    %s123 = sphi 0, %s109
    %s127 = sphi 0, %s127
    %s129 = sphi 0, %s127
    %s130 = sphi 0, %s129
    %s144 = sphi 0, %s130
    %s148 = sphi 0, %s148
    %s150 = sphi 0, %s148
    %s151 = sphi 0, %s150
    %s165 = sphi 0, %s151
    %s169 = sphi 0, %s169
    %s171 = sphi 0, %s169
    %s172 = sphi 0, %s171
    %s186 = sphi 0, %s172
    %s190 = sphi 0, %s190
    %s192 = sphi 0, %s190
    %s193 = sphi 0, %s192
    %s207 = sphi 0, %s193
    %s211 = sphi 0, %s211
    %s213 = sphi 0, %s211
    %s214 = sphi 0, %s213
    %s228 = sphi 0, %s214
    %s232 = sphi 0, %s232
    %s234 = sphi 0, %s232
    %s235 = sphi 0, %s234
    %s249 = sphi 0, %s235
    %s253 = sphi 0, %s253
    %s255 = sphi 0, %s253
    %s256 = sphi 0, %s255
    %s270 = sphi 0, %s256
    %s274 = sphi 0, %s274
    %s276 = sphi 0, %s274
    %s277 = sphi 0, %s276
    %s291 = sphi 0, %s277
    %s297 = sphi 0, %s299
    %s300 = sphi 0, %s297
    %s301 = sphi 0, %s300
    %s317 = sphi 0, %s301
  $region4: #{bert_forward.1} parent=0 // loop_header_branch
    %28 = sbr.rel (%p26) target = $region8
  $region5: #{bert_forward.1} parent=0 // loop_body
    %s30 = ssub.s32 %s25, 1
    %s31 = ssub.s32 %s25, 2
    %s32 = sadd.s32 %s25, 1
    %s33 = ssub.s32 %s25, %s32
    %p34 = scmp.eq.s32.totalorder %s33, 0
    %s36 = sadd.s32 %s35, 1
    %s37 = scalar_select %p34, %s35, %s36
    %p40 = pneg %p34
    %p41 = scmp.eq.s32.totalorder %s25, 1
    %p42 = por %p40, %p41
    %p43 = scmp.ne.s32.totalorder %s35, %s38
    %p44 = scmp.eq.s32.totalorder %s25, 0
    %p45 = por %p43, %p44
    %p46 = scmp.ne.s32.totalorder %s35, %s38
    %p47 = scmp.eq.s32.totalorder %s30, 1
    %p48 = por %p46, %p47
    %p49 = scmp.ne.s32.totalorder %s38, %s39
    %p50 = scmp.eq.s32.totalorder %s30, 0
    %p51 = por %p49, %p50
    %p52 = scmp.ne.s32.totalorder %s38, %s39
    %p53 = scmp.eq.s32.totalorder %s31, 1
    %p54 = por %p52, %p53
    %p56 = scmp.ne.s32.totalorder %s39, %s55
    %p57 = scmp.eq.s32.totalorder %s31, 0
    %p58 = por %p56, %p57
    %s59 = ssub.s32 %s25, %s32
    %p60 = scmp.eq.s32.totalorder %s59, 0
    %s62 = sadd.s32 %s61, 1
    %s63 = scalar_select %p60, %s61, %s62
    %p66 = pneg %p60
    %p67 = scmp.eq.s32.totalorder %s25, 1
    %p68 = por %p66, %p67
    %p69 = scmp.ne.s32.totalorder %s61, %s64
    %p70 = scmp.eq.s32.totalorder %s25, 0
    %p71 = por %p69, %p70
    %p72 = scmp.ne.s32.totalorder %s61, %s64
    %p73 = scmp.eq.s32.totalorder %s30, 1
    %p74 = por %p72, %p73
    %p75 = scmp.ne.s32.totalorder %s64, %s65
    %p76 = scmp.eq.s32.totalorder %s30, 0
    %p77 = por %p75, %p76
    %p78 = scmp.ne.s32.totalorder %s64, %s65
    %p79 = scmp.eq.s32.totalorder %s31, 1
    %p80 = por %p78, %p79
    %p82 = scmp.ne.s32.totalorder %s65, %s81
    %p83 = scmp.eq.s32.totalorder %s31, 0
    %p84 = por %p82, %p83
    %s86 = sadd.s32 %s85, 1
    %p89 = scmp.eq.s32.totalorder %s25, 1
    %p90 = scmp.ne.s32.totalorder %s85, %s87
    %p91 = scmp.eq.s32.totalorder %s25, 0
    %p92 = por %p90, %p91
    %p93 = scmp.ne.s32.totalorder %s85, %s87
    %p94 = scmp.eq.s32.totalorder %s30, 1
    %p95 = por %p93, %p94
    %p96 = scmp.ne.s32.totalorder %s87, %s88
    %p97 = scmp.eq.s32.totalorder %s30, 0
    %p98 = por %p96, %p97
    %p99 = scmp.ne.s32.totalorder %s87, %s88
    %p100 = scmp.eq.s32.totalorder %s31, 1
    %p101 = por %p99, %p100
    %p103 = scmp.ne.s32.totalorder %s88, %s102
    %p104 = scmp.eq.s32.totalorder %s31, 0
    %p105 = por %p103, %p104
    %s107 = sadd.s32 %s106, 1
    %p110 = scmp.eq.s32.totalorder %s25, 1
    %p111 = scmp.ne.s32.totalorder %s106, %s108
    %p112 = scmp.eq.s32.totalorder %s25, 0
    %p113 = por %p111, %p112
    %p114 = scmp.ne.s32.totalorder %s106, %s108
    %p115 = scmp.eq.s32.totalorder %s30, 1
    %p116 = por %p114, %p115
    %p117 = scmp.ne.s32.totalorder %s108, %s109
    %p118 = scmp.eq.s32.totalorder %s30, 0
    %p119 = por %p117, %p118
    %p120 = scmp.ne.s32.totalorder %s108, %s109
    %p121 = scmp.eq.s32.totalorder %s31, 1
    %p122 = por %p120, %p121
    %p124 = scmp.ne.s32.totalorder %s109, %s123
    %p125 = scmp.eq.s32.totalorder %s31, 0
    %p126 = por %p124, %p125
    %s128 = sadd.s32 %s127, 1
    %p131 = scmp.eq.s32.totalorder %s25, 1
    %p132 = scmp.ne.s32.totalorder %s127, %s129
    %p133 = scmp.eq.s32.totalorder %s25, 0
    %p134 = por %p132, %p133
    %p135 = scmp.ne.s32.totalorder %s127, %s129
    %p136 = scmp.eq.s32.totalorder %s30, 1
    %p137 = por %p135, %p136
    %p138 = scmp.ne.s32.totalorder %s129, %s130
    %p139 = scmp.eq.s32.totalorder %s30, 0
    %p140 = por %p138, %p139
    %p141 = scmp.ne.s32.totalorder %s129, %s130
    %p142 = scmp.eq.s32.totalorder %s31, 1
    %p143 = por %p141, %p142
    %p145 = scmp.ne.s32.totalorder %s130, %s144
    %p146 = scmp.eq.s32.totalorder %s31, 0
    %p147 = por %p145, %p146
    %s149 = sadd.s32 %s148, 1
    %p152 = scmp.eq.s32.totalorder %s25, 1
    %p153 = scmp.ne.s32.totalorder %s148, %s150
    %p154 = scmp.eq.s32.totalorder %s25, 0
    %p155 = por %p153, %p154
    %p156 = scmp.ne.s32.totalorder %s148, %s150
    %p157 = scmp.eq.s32.totalorder %s30, 1
    %p158 = por %p156, %p157
    %p159 = scmp.ne.s32.totalorder %s150, %s151
    %p160 = scmp.eq.s32.totalorder %s30, 0
    %p161 = por %p159, %p160
    %p162 = scmp.ne.s32.totalorder %s150, %s151
    %p163 = scmp.eq.s32.totalorder %s31, 1
    %p164 = por %p162, %p163
    %p166 = scmp.ne.s32.totalorder %s151, %s165
    %p167 = scmp.eq.s32.totalorder %s31, 0
    %p168 = por %p166, %p167
    %s170 = sadd.s32 %s169, 1
    %p173 = scmp.eq.s32.totalorder %s25, 1
    %p174 = scmp.ne.s32.totalorder %s169, %s171
    %p175 = scmp.eq.s32.totalorder %s25, 0
    %p176 = por %p174, %p175
    %p177 = scmp.ne.s32.totalorder %s169, %s171
    %p178 = scmp.eq.s32.totalorder %s30, 1
    %p179 = por %p177, %p178
    %p180 = scmp.ne.s32.totalorder %s171, %s172
    %p181 = scmp.eq.s32.totalorder %s30, 0
    %p182 = por %p180, %p181
    %p183 = scmp.ne.s32.totalorder %s171, %s172
    %p184 = scmp.eq.s32.totalorder %s31, 1
    %p185 = por %p183, %p184
    %p187 = scmp.ne.s32.totalorder %s172, %s186
    %p188 = scmp.eq.s32.totalorder %s31, 0
    %p189 = por %p187, %p188
    %s191 = sadd.s32 %s190, 1
    %p194 = scmp.eq.s32.totalorder %s25, 1
    %p195 = scmp.ne.s32.totalorder %s190, %s192
    %p196 = scmp.eq.s32.totalorder %s25, 0
    %p197 = por %p195, %p196
    %p198 = scmp.ne.s32.totalorder %s190, %s192
    %p199 = scmp.eq.s32.totalorder %s30, 1
    %p200 = por %p198, %p199
    %p201 = scmp.ne.s32.totalorder %s192, %s193
    %p202 = scmp.eq.s32.totalorder %s30, 0
    %p203 = por %p201, %p202
    %p204 = scmp.ne.s32.totalorder %s192, %s193
    %p205 = scmp.eq.s32.totalorder %s31, 1
    %p206 = por %p204, %p205
    %p208 = scmp.ne.s32.totalorder %s193, %s207
    %p209 = scmp.eq.s32.totalorder %s31, 0
    %p210 = por %p208, %p209
    %s212 = sadd.s32 %s211, 1
    %p215 = scmp.eq.s32.totalorder %s25, 1
    %p216 = scmp.ne.s32.totalorder %s211, %s213
    %p217 = scmp.eq.s32.totalorder %s25, 0
    %p218 = por %p216, %p217
    %p219 = scmp.ne.s32.totalorder %s211, %s213
    %p220 = scmp.eq.s32.totalorder %s30, 1
    %p221 = por %p219, %p220
    %p222 = scmp.ne.s32.totalorder %s213, %s214
    %p223 = scmp.eq.s32.totalorder %s30, 0
    %p224 = por %p222, %p223
    %p225 = scmp.ne.s32.totalorder %s213, %s214
    %p226 = scmp.eq.s32.totalorder %s31, 1
    %p227 = por %p225, %p226
    %p229 = scmp.ne.s32.totalorder %s214, %s228
    %p230 = scmp.eq.s32.totalorder %s31, 0
    %p231 = por %p229, %p230
    %s233 = sadd.s32 %s232, 1
    %p236 = scmp.eq.s32.totalorder %s25, 1
    %p237 = scmp.ne.s32.totalorder %s232, %s234
    %p238 = scmp.eq.s32.totalorder %s25, 0
    %p239 = por %p237, %p238
    %p240 = scmp.ne.s32.totalorder %s232, %s234
    %p241 = scmp.eq.s32.totalorder %s30, 1
    %p242 = por %p240, %p241
    %p243 = scmp.ne.s32.totalorder %s234, %s235
    %p244 = scmp.eq.s32.totalorder %s30, 0
    %p245 = por %p243, %p244
    %p246 = scmp.ne.s32.totalorder %s234, %s235
    %p247 = scmp.eq.s32.totalorder %s31, 1
    %p248 = por %p246, %p247
    %p250 = scmp.ne.s32.totalorder %s235, %s249
    %p251 = scmp.eq.s32.totalorder %s31, 0
    %p252 = por %p250, %p251
    %s254 = sadd.s32 %s253, 1
    %p257 = scmp.eq.s32.totalorder %s25, 1
    %p258 = scmp.ne.s32.totalorder %s253, %s255
    %p259 = scmp.eq.s32.totalorder %s25, 0
    %p260 = por %p258, %p259
    %p261 = scmp.ne.s32.totalorder %s253, %s255
    %p262 = scmp.eq.s32.totalorder %s30, 1
    %p263 = por %p261, %p262
    %p264 = scmp.ne.s32.totalorder %s255, %s256
    %p265 = scmp.eq.s32.totalorder %s30, 0
    %p266 = por %p264, %p265
    %p267 = scmp.ne.s32.totalorder %s255, %s256
    %p268 = scmp.eq.s32.totalorder %s31, 1
    %p269 = por %p267, %p268
    %p271 = scmp.ne.s32.totalorder %s256, %s270
    %p272 = scmp.eq.s32.totalorder %s31, 0
    %p273 = por %p271, %p272
    %s275 = sadd.s32 %s274, 1
    %p278 = scmp.eq.s32.totalorder %s25, 1
    %p279 = scmp.ne.s32.totalorder %s274, %s276
    %p280 = scmp.eq.s32.totalorder %s25, 0
    %p281 = por %p279, %p280
    %p282 = scmp.ne.s32.totalorder %s274, %s276
    %p283 = scmp.eq.s32.totalorder %s30, 1
    %p284 = por %p282, %p283
    %p285 = scmp.ne.s32.totalorder %s276, %s277
    %p286 = scmp.eq.s32.totalorder %s30, 0
    %p287 = por %p285, %p286
    %p288 = scmp.ne.s32.totalorder %s276, %s277
    %p289 = scmp.eq.s32.totalorder %s31, 1
    %p290 = por %p288, %p289
    %p292 = scmp.ne.s32.totalorder %s277, %s291
    %p293 = scmp.eq.s32.totalorder %s31, 0
    %p294 = por %p292, %p293
    %s295 = ssub.s32 %s25, %s32
    %p296 = scmp.eq.s32.totalorder %s295, 0
    %s298 = sadd.s32 %s297, 1
    %s299 = scalar_select %p296, %s297, %s298
    %p302 = pneg %p296
    %p303 = scmp.eq.s32.totalorder %s25, 1
    %p304 = por %p302, %p303
    %p305 = scmp.ne.s32.totalorder %s297, %s300
    %p306 = scmp.eq.s32.totalorder %s25, 0
    %p307 = por %p305, %p306
    %p308 = scmp.ne.s32.totalorder %s297, %s300
    %p309 = scmp.eq.s32.totalorder %s30, 1
    %p310 = por %p308, %p309
    %p311 = scmp.ne.s32.totalorder %s300, %s301
    %p312 = scmp.eq.s32.totalorder %s30, 0
    %p313 = por %p311, %p312
    %p314 = scmp.ne.s32.totalorder %s300, %s301
    %p315 = scmp.eq.s32.totalorder %s31, 1
    %p316 = por %p314, %p315
    %p318 = scmp.ne.s32.totalorder %s301, %s317
    %p319 = scmp.eq.s32.totalorder %s31, 0
    %p320 = por %p318, %p319
    %p321 = scmp.le.s32.totalorder 1, %s25
    %p322 = scmp.lt.s32.totalorder %s25, 3
    %p323 = pnand %p321, %p322
    %p324 = pneg %p323
    // Predicated region
    $region9: #{bert_forward.1} parent=5 // pred_check
      _
    $region10: #{bert_forward.1} parent=5 // pred_check_branch
      %326 = sbr.rel (%p323) target = $region12
    $region11: #{bert_forward.1} parent=5 // pred_region
      %s327 = ssub.s32 %s25, 1
      // Predicated region
      $region13: #{bert_forward.1} parent=11 // pred_check
        %p328 = pneg %p98
      $region14: #{bert_forward.1} parent=11 // pred_check_branch
        %330 = sbr.rel (%p328) target = $region16
      $region15: #{bert_forward.1} parent=11 // pred_region
        _
      $region16: #{bert_forward.1} parent=11 // pred_fallthru
        _
      // Predicated region
      $region17: #{bert_forward.1} parent=11 // pred_check
        %p331 = pneg %p119
      $region18: #{bert_forward.1} parent=11 // pred_check_branch
        %333 = sbr.rel (%p331) target = $region20
      $region19: #{bert_forward.1} parent=11 // pred_region
        _
      $region20: #{bert_forward.1} parent=11 // pred_fallthru
        _
      // Predicated region
      $region21: #{bert_forward.1} parent=11 // pred_check
        %p334 = pneg %p140
      $region22: #{bert_forward.1} parent=11 // pred_check_branch
        %336 = sbr.rel (%p334) target = $region24
      $region23: #{bert_forward.1} parent=11 // pred_region
        _
      $region24: #{bert_forward.1} parent=11 // pred_fallthru
        _
      // Predicated region
      $region25: #{bert_forward.1} parent=11 // pred_check
        %p337 = pneg %p161
      $region26: #{bert_forward.1} parent=11 // pred_check_branch
        %339 = sbr.rel (%p337) target = $region28
      $region27: #{bert_forward.1} parent=11 // pred_region
        _
      $region28: #{bert_forward.1} parent=11 // pred_fallthru
        _
      // Predicated region
      $region29: #{bert_forward.1} parent=11 // pred_check
        %p340 = pneg %p182
      $region30: #{bert_forward.1} parent=11 // pred_check_branch
        %342 = sbr.rel (%p340) target = $region32
      $region31: #{bert_forward.1} parent=11 // pred_region
        _
      $region32: #{bert_forward.1} parent=11 // pred_fallthru
        _
      // Predicated region
      $region33: #{bert_forward.1} parent=11 // pred_check
        %p343 = pneg %p203
      $region34: #{bert_forward.1} parent=11 // pred_check_branch
        %345 = sbr.rel (%p343) target = $region36
      $region35: #{bert_forward.1} parent=11 // pred_region
        _
      $region36: #{bert_forward.1} parent=11 // pred_fallthru
        _
      // Predicated region
      $region37: #{bert_forward.1} parent=11 // pred_check
        %p346 = pneg %p224
      $region38: #{bert_forward.1} parent=11 // pred_check_branch
        %348 = sbr.rel (%p346) target = $region40
      $region39: #{bert_forward.1} parent=11 // pred_region
        _
      $region40: #{bert_forward.1} parent=11 // pred_fallthru
        _
      // Predicated region
      $region41: #{bert_forward.1} parent=11 // pred_check
        %p349 = pneg %p245
      $region42: #{bert_forward.1} parent=11 // pred_check_branch
        %351 = sbr.rel (%p349) target = $region44
      $region43: #{bert_forward.1} parent=11 // pred_region
        _
      $region44: #{bert_forward.1} parent=11 // pred_fallthru
        _
      // Predicated region
      $region45: #{bert_forward.1} parent=11 // pred_check
        %p352 = pneg %p266
      $region46: #{bert_forward.1} parent=11 // pred_check_branch
        %354 = sbr.rel (%p352) target = $region48
      $region47: #{bert_forward.1} parent=11 // pred_region
        _
      $region48: #{bert_forward.1} parent=11 // pred_fallthru
        _
      // Predicated region
      $region49: #{bert_forward.1} parent=11 // pred_check
        %p355 = pneg %p287
      $region50: #{bert_forward.1} parent=11 // pred_check_branch
        %357 = sbr.rel (%p355) target = $region52
      $region51: #{bert_forward.1} parent=11 // pred_region
        _
      $region52: #{bert_forward.1} parent=11 // pred_fallthru
        _
    $region12: #{bert_forward.1} parent=5 // pred_fallthru
      _
    %p358 = scmp.lt.s32.totalorder %s25, 2
    // Predicated region
    $region53: #{bert_forward.1} parent=5 // pred_check
      %p359 = pneg %p358
    $region54: #{bert_forward.1} parent=5 // pred_check_branch
      %361 = sbr.rel (%p359) target = $region56
    $region55: #{bert_forward.1} parent=5 // pred_region
      // Predicated region
      $region57: #{bert_forward.1} parent=55 // pred_check
        %p362 = pneg %p45
      $region58: #{bert_forward.1} parent=55 // pred_check_branch
        %364 = sbr.rel (%p362) target = $region60
      $region59: #{bert_forward.1} parent=55 // pred_region
        %p365 = scmp.lt.s32.totalorder %s25, 1
        %s366 = scalar_select %p365, %s25, 1
        %s367 = smul.addr %s366, 8
        %s368 = scalar_lea.vmem %s1, %s367
      $region60: #{bert_forward.1} parent=55 // pred_fallthru
        _
      // Predicated region
      $region61: #{bert_forward.1} parent=55 // pred_check
        %p369 = pneg %p71
      $region62: #{bert_forward.1} parent=55 // pred_check_branch
        %371 = sbr.rel (%p369) target = $region64
      $region63: #{bert_forward.1} parent=55 // pred_region
        %p372 = scmp.lt.s32.totalorder %s25, 1
        %s373 = scalar_select %p372, %s25, 1
        %s374 = scalar_lea.vmem %s2, %s373
      $region64: #{bert_forward.1} parent=55 // pred_fallthru
        _
    $region56: #{bert_forward.1} parent=5 // pred_fallthru
      _
    %p375 = scmp.le.s32.totalorder 1, %s25
    %p376 = scmp.lt.s32.totalorder %s25, 3
    %p377 = pnand %p375, %p376
    %p378 = pneg %p377
    // Predicated region
    $region65: #{bert_forward.1} parent=5 // pred_check
      _
    $region66: #{bert_forward.1} parent=5 // pred_check_branch
      %380 = sbr.rel (%p377) target = $region68
    $region67: #{bert_forward.1} parent=5 // pred_region
      %s381 = ssub.s32 %s25, 1
      %p382 = scmp.lt.s32.totalorder %s30, 1
      %s383 = scalar_select %p382, %s30, 1
      %s384 = smul.addr %s383, 8
      %s385 = scalar_lea.vmem %s1, %s384
      %p386 = pneg %p51
      %p387 = pneg %p48
      %p388 = scmp.lt.s32.totalorder %s30, 1
      %s389 = scalar_select %p388, %s30, 1
      %s390 = scalar_lea.vmem %s2, %s389
      %p391 = pneg %p77
      %p392 = pneg %p74
      %p393 = pneg %p98
      %p394 = pneg %p95
      %p395 = pneg %p119
      %p396 = pneg %p116
      %p397 = pneg %p140
      %p398 = pneg %p137
      %p399 = pneg %p161
      %p400 = pneg %p158
      %p401 = pneg %p182
      %p402 = pneg %p179
      %p403 = pneg %p203
      %p404 = pneg %p200
      %p405 = pneg %p224
      %p406 = pneg %p221
      %p407 = pneg %p245
      %p408 = pneg %p242
      %p409 = pneg %p266
      %p410 = pneg %p263
      %p411 = pneg %p287
      %p412 = pneg %p284
      %p413 = pneg %p313
      %p414 = pneg %p310
      %p415 = scmp.lt.s32.totalorder %s30, 1
      %s416 = scalar_select %p415, %s30, 1
      %s417 = smul.addr %s416, 4
      %s418 = scalar_lea.vmem %s13, %s417
      %p419 = scmp.lt.s32.totalorder %s30, 1
      %s420 = scalar_select %p419, %s30, 1
      %s421 = smul.addr %s420, 8
      %s422 = scalar_lea.vmem %s1, %s421
      %p423 = scmp.lt.s32.totalorder %s30, 1
      %s424 = scalar_select %p423, %s30, 1
      %s425 = scalar_lea.vmem %s2, %s424
      %p426 = scmp.lt.s32.totalorder %s30, 1
      %s427 = scalar_select %p426, %s30, 1
      %s428 = smul.addr %s427, 4
      %s429 = scalar_lea.vmem %s13, %s428
      %v430 = vld [vmem:[%s422] sm:$0xff]
      %v431 = vld [vmem:[%s3] sm:$0x1]
      %v432 = vld [vmem:[%s3 + $0x1] sm:$0x1]
      %vm433 = vcmask 261120
      %v434 = vsel %vm433, %v430, 0.0
      %435 = vadd.xlane.f32.xlu0 %v434
      %v436 = vpop.xlane.xlu0 %435
      %v437 = vrcp.pop 32.0
      %v438 = vmul.f32 %v436, %v437
      %v439 = vsub.f32 %v430, %v438
      %v440 = vmul.f32 %v439, %v439
      %v441 = vsel %vm433, %v440, 0.0
      %442 = vadd.xlane.f32.xlu0 %v441
      %v443 = vpop.xlane.xlu0 %442
      %v444 = vmul.f32 %v443, %v437
      %v445 = vadd.f32 %v444, 1e-12
      %v446 = vrsqrt.pop %v445
      %v447 = vmul.f32 %v439, %v446
      %v448 = vlaneseq
      %v449 = vshrl.u32 %v448, 7
      %v450 = vsub.s32 0, %v449
      %v451 = vrot.slane %v431, %v450
      %v452 = vmul.f32 %v447, %v451
      %v453 = vlaneseq
      %v454 = vshrl.u32 %v453, 7
      %v455 = vsub.s32 0, %v454
      %v456 = vrot.slane %v432, %v455
      %v457 = vadd.f32 %v452, %v456
      %v458 = vld [vmem:[%s4] sm:$0xff]
      %v459 = vld [vmem:[%s4 + $0x8] sm:$0xff]
      %v460 = vld [vmem:[%s4 + $0x10] sm:$0xff]
      %v461 = vld [vmem:[%s4 + $0x18] sm:$0xff]
      %v462 = vld [vmem:[%s5] sm:$0x1]
      %v464 = vlaneseq
      %v465 = vshrl.u32 %v464, 7
      %v466 = vsub.s32 0, %v465
      %v467 = vrot.slane %v462, %v466
      %v470 = vsel %vm433, %v457, 0
      %472 = vmatprep.subr.mxu0 0.0
      %473 = vmatpush1.msra.mxu0 %v458
      %474 = vmatprep.subr.mxu0 0.0
      %475 = vmatpush1.msra.mxu0 %v459
      %476 = vmatprep.subr.mxu0 0.0
      %477 = vmatpush1.msra.mxu0 %v460
      %478 = vmatprep.subr.mxu0 0.0
      %479 = vmatpush1.msra.mxu0 %v461
      %480 = vmatprep.subr.mxu0 0.0
      %481 = vmatpush1.msra.mxu0 0.0
      %482 = vmatprep.subr.mxu0 0.0
      %483 = vmatpush1.msra.mxu0 0.0
      %484 = vmatprep.subr.mxu0 0.0
      %485 = vmatpush1.msra.mxu0 0.0
      %486 = vmatprep.subr.mxu0 0.0
      %487 = vmatpush1.msra.mxu0 0.0
      %488 = vmatprep.subr.mxu0 0.0
      %489 = vmatpush1.msra.mxu0 0.0
      %490 = vmatprep.subr.mxu0 0.0
      %491 = vmatpush1.msra.mxu0 0.0
      %492 = vmatprep.subr.mxu0 0.0
      %493 = vmatpush1.msra.mxu0 0.0
      %494 = vmatprep.subr.mxu0 0.0
      %495 = vmatpush1.msra.mxu0 0.0
      %496 = vmatprep.subr.mxu0 0.0
      %497 = vmatpush1.msra.mxu0 0.0
      %498 = vmatprep.subr.mxu0 0.0
      %499 = vmatpush1.msra.mxu0 0.0
      %500 = vmatprep.subr.mxu0 0.0
      %501 = vmatpush1.msra.mxu0 0.0
      %502 = vmatprep.subr.mxu0 0.0
      %503 = vmatpush1.msra.mxu0 0.0
      %504 = vmatprep.subr.mxu0 0.0
      %505 = vmatpush1.msra.mxu0 0.0
      %506 = vmatprep.subr.mxu0 0.0
      %507 = vmatpush1.msra.mxu0 0.0
      %508 = vmatprep.subr.mxu0 0.0
      %509 = vmatpush1.msra.mxu0 0.0
      %510 = vmatprep.subr.mxu0 0.0
      %511 = vmatpush1.msra.mxu0 0.0
      %512 = vmatprep.subr.mxu0 0.0
      %513 = vmatpush1.msra.mxu0 0.0
      %514 = vmatprep.subr.mxu0 0.0
      %515 = vmatpush1.msra.mxu0 0.0
      %516 = vmatprep.subr.mxu0 0.0
      %517 = vmatpush1.msra.mxu0 0.0
      %518 = vmatprep.subr.mxu0 0.0
      %519 = vmatpush1.msra.mxu0 0.0
      %520 = vmatprep.subr.mxu0 0.0
      %521 = vmatpush1.msra.mxu0 0.0
      %522 = vmatprep.subr.mxu0 0.0
      %523 = vmatpush1.msra.mxu0 0.0
      %524 = vmatprep.subr.mxu0 0.0
      %525 = vmatpush1.msra.mxu0 0.0
      %526 = vmatprep.subr.mxu0 0.0
      %527 = vmatpush1.msra.mxu0 0.0
      %528 = vmatprep.subr.mxu0 0.0
      %529 = vmatpush1.msra.mxu0 0.0
      %530 = vmatprep.subr.mxu0 0.0
      %531 = vmatpush1.msra.mxu0 0.0
      %532 = vmatprep.subr.mxu0 0.0
      %533 = vmatpush1.msra.mxu0 0.0
      %534 = vmatprep.subr.mxu0 0.0
      %535 = vmatpush1.msra.mxu0 0.0
      %536 = vmatprep.mubr.f32.mxu0 0.0
      %537 = vmatmul.mubr.f32.gmra.mrb[0].mxu0 %v470
      %v538 = vpop.f32.mrb[0].mxu0
      %v539 = vadd.f32 %v467, %v538
      %v540 = vpop.f32.mrb[0].mxu0
      %541 = vdwg.mxu0
      %543 = vrot.lane.b32.xlu0 %v539, 112
      %v544 = vpop.permute.xlu0 %543
      %545 = vrot.lane.b32.xlu0 %v539, 96
      %v546 = vpop.permute.xlu0 %545
      %vm547 = vcmask 130048
      %v548 = vsel %vm547, %v539, 0
      %v550 = vsel %vm547, %v546, 0
      %552 = vmatprep.subr.mxu0 0.0
      %553 = vmatpush1.xpose.msra.mxu0 %v550
      %554 = vmatprep.subr.mxu0 0.0
      %555 = vmatpush1.xpose.msra.mxu0 0.0
      %556 = vmatprep.subr.mxu0 0.0
      %557 = vmatpush1.xpose.msra.mxu0 0.0
      %558 = vmatprep.subr.mxu0 0.0
      %559 = vmatpush1.xpose.msra.mxu0 0.0
      %560 = vmatprep.subr.mxu0 0.0
      %561 = vmatpush1.xpose.msra.mxu0 0.0
      %562 = vmatprep.subr.mxu0 0.0
      %563 = vmatpush1.xpose.msra.mxu0 0.0
      %564 = vmatprep.subr.mxu0 0.0
      %565 = vmatpush1.xpose.msra.mxu0 0.0
      %566 = vmatprep.subr.mxu0 0.0
      %567 = vmatpush1.xpose.msra.mxu0 0.0
      %568 = vmatprep.subr.mxu0 0.0
      %569 = vmatpush1.xpose.msra.mxu0 0.0
      %570 = vmatprep.subr.mxu0 0.0
      %571 = vmatpush1.xpose.msra.mxu0 0.0
      %572 = vmatprep.subr.mxu0 0.0
      %573 = vmatpush1.xpose.msra.mxu0 0.0
      %574 = vmatprep.subr.mxu0 0.0
      %575 = vmatpush1.xpose.msra.mxu0 0.0
      %576 = vmatprep.subr.mxu0 0.0
      %577 = vmatpush1.xpose.msra.mxu0 0.0
      %578 = vmatprep.subr.mxu0 0.0
      %579 = vmatpush1.xpose.msra.mxu0 0.0
      %580 = vmatprep.subr.mxu0 0.0
      %581 = vmatpush1.xpose.msra.mxu0 0.0
      %582 = vmatprep.subr.mxu0 0.0
      %583 = vmatpush1.xpose.msra.mxu0 0.0
      %584 = vmatprep.subr.mxu0 0.0
      %585 = vmatpush1.xpose.msra.mxu0 0.0
      %586 = vmatprep.subr.mxu0 0.0
      %587 = vmatpush1.xpose.msra.mxu0 0.0
      %588 = vmatprep.subr.mxu0 0.0
      %589 = vmatpush1.xpose.msra.mxu0 0.0
      %590 = vmatprep.subr.mxu0 0.0
      %591 = vmatpush1.xpose.msra.mxu0 0.0
      %592 = vmatprep.subr.mxu0 0.0
      %593 = vmatpush1.xpose.msra.mxu0 0.0
      %594 = vmatprep.subr.mxu0 0.0
      %595 = vmatpush1.xpose.msra.mxu0 0.0
      %596 = vmatprep.subr.mxu0 0.0
      %597 = vmatpush1.xpose.msra.mxu0 0.0
      %598 = vmatprep.subr.mxu0 0.0
      %599 = vmatpush1.xpose.msra.mxu0 0.0
      %600 = vmatprep.subr.mxu0 0.0
      %601 = vmatpush1.xpose.msra.mxu0 0.0
      %602 = vmatprep.subr.mxu0 0.0
      %603 = vmatpush1.xpose.msra.mxu0 0.0
      %604 = vmatprep.subr.mxu0 0.0
      %605 = vmatpush1.xpose.msra.mxu0 0.0
      %606 = vmatprep.subr.mxu0 0.0
      %607 = vmatpush1.xpose.msra.mxu0 0.0
      %608 = vmatprep.subr.mxu0 0.0
      %609 = vmatpush1.xpose.msra.mxu0 0.0
      %610 = vmatprep.subr.mxu0 0.0
      %611 = vmatpush1.xpose.msra.mxu0 0.0
      %612 = vmatprep.subr.mxu0 0.0
      %613 = vmatpush1.xpose.msra.mxu0 0.0
      %614 = vmatprep.subr.mxu0 0.0
      %615 = vmatpush1.xpose.msra.mxu0 0.0
      %616 = vmatprep.mubr.f32.mxu0 0.0
      %617 = vmatmul.mubr.f32.gmra.mrb[0].mxu0 %v548
      %v618 = vpop.f32.mrb[0].mxu0
      %v619 = vadd.f32 0.0, %v618
      %v620 = vpop.f32.mrb[0].mxu0
      %621 = vdwg.mxu0
      %622 = vrot.lane.b32.xlu0 %v544, 96
      %v623 = vpop.permute.xlu0 %622
      %v624 = vsel %vm547, %v544, 0
      %v626 = vsel %vm547, %v623, 0
      %628 = vmatprep.subr.mxu0 0.0
      %629 = vmatpush1.xpose.msra.mxu0 %v626
      %630 = vmatprep.subr.mxu0 0.0
      %631 = vmatpush1.xpose.msra.mxu0 0.0
      %632 = vmatprep.subr.mxu0 0.0
      %633 = vmatpush1.xpose.msra.mxu0 0.0
      %634 = vmatprep.subr.mxu0 0.0
      %635 = vmatpush1.xpose.msra.mxu0 0.0
      %636 = vmatprep.subr.mxu0 0.0
      %637 = vmatpush1.xpose.msra.mxu0 0.0
      %638 = vmatprep.subr.mxu0 0.0
      %639 = vmatpush1.xpose.msra.mxu0 0.0
      %640 = vmatprep.subr.mxu0 0.0
      %641 = vmatpush1.xpose.msra.mxu0 0.0
      %642 = vmatprep.subr.mxu0 0.0
      %643 = vmatpush1.xpose.msra.mxu0 0.0
      %644 = vmatprep.subr.mxu0 0.0
      %645 = vmatpush1.xpose.msra.mxu0 0.0
      %646 = vmatprep.subr.mxu0 0.0
      %647 = vmatpush1.xpose.msra.mxu0 0.0
      %648 = vmatprep.subr.mxu0 0.0
      %649 = vmatpush1.xpose.msra.mxu0 0.0
      %650 = vmatprep.subr.mxu0 0.0
      %651 = vmatpush1.xpose.msra.mxu0 0.0
      %652 = vmatprep.subr.mxu0 0.0
      %653 = vmatpush1.xpose.msra.mxu0 0.0
      %654 = vmatprep.subr.mxu0 0.0
      %655 = vmatpush1.xpose.msra.mxu0 0.0
      %656 = vmatprep.subr.mxu0 0.0
      %657 = vmatpush1.xpose.msra.mxu0 0.0
      %658 = vmatprep.subr.mxu0 0.0
      %659 = vmatpush1.xpose.msra.mxu0 0.0
      %660 = vmatprep.subr.mxu0 0.0
      %661 = vmatpush1.xpose.msra.mxu0 0.0
      %662 = vmatprep.subr.mxu0 0.0
      %663 = vmatpush1.xpose.msra.mxu0 0.0
      %664 = vmatprep.subr.mxu0 0.0
      %665 = vmatpush1.xpose.msra.mxu0 0.0
      %666 = vmatprep.subr.mxu0 0.0
      %667 = vmatpush1.xpose.msra.mxu0 0.0
      %668 = vmatprep.subr.mxu0 0.0
      %669 = vmatpush1.xpose.msra.mxu0 0.0
      %670 = vmatprep.subr.mxu0 0.0
      %671 = vmatpush1.xpose.msra.mxu0 0.0
      %672 = vmatprep.subr.mxu0 0.0
      %673 = vmatpush1.xpose.msra.mxu0 0.0
      %674 = vmatprep.subr.mxu0 0.0
      %675 = vmatpush1.xpose.msra.mxu0 0.0
      %676 = vmatprep.subr.mxu0 0.0
      %677 = vmatpush1.xpose.msra.mxu0 0.0
      %678 = vmatprep.subr.mxu0 0.0
      %679 = vmatpush1.xpose.msra.mxu0 0.0
      %680 = vmatprep.subr.mxu0 0.0
      %681 = vmatpush1.xpose.msra.mxu0 0.0
      %682 = vmatprep.subr.mxu0 0.0
      %683 = vmatpush1.xpose.msra.mxu0 0.0
      %684 = vmatprep.subr.mxu0 0.0
      %685 = vmatpush1.xpose.msra.mxu0 0.0
      %686 = vmatprep.subr.mxu0 0.0
      %687 = vmatpush1.xpose.msra.mxu0 0.0
      %688 = vmatprep.subr.mxu0 0.0
      %689 = vmatpush1.xpose.msra.mxu0 0.0
      %690 = vmatprep.subr.mxu0 0.0
      %691 = vmatpush1.xpose.msra.mxu0 0.0
      %692 = vmatprep.mubr.f32.mxu0 0.0
      %693 = vmatmul.mubr.f32.gmra.mrb[0].mxu0 %v624
      %v694 = vpop.f32.mrb[0].mxu0
      %v695 = vadd.f32 0.0, %v694
      %v696 = vpop.f32.mrb[0].mxu0
      %697 = vdwg.mxu0
      %v698 = vmul.f32 %v619, 0.25
      %v699 = vmul.f32 %v695, 0.25
      %v700 = vld [vmem:[%s425] sm:$0x1]
      %v702 = vlaneseq
      %v703 = vshrl.u32 %v702, 7
      %v704 = vsub.s32 0, %v703
      %v705 = vrot.slane %v700, %v704
      %v707 = vadd.f32 %v698, %v705
      %v708 = vadd.f32 %v699, %v705
      %vm709 = vcmask 64512
      %v710 = vsel %vm709, %v707, -inf
      %711 = vmax.xlane.f32.xlu0 %v710
      %v712 = vpop.xlane.xlu0 %711
      %v713 = vsel %vm709, %v708, -inf
      %714 = vmax.xlane.f32.xlu0 %v713
      %v715 = vpop.xlane.xlu0 %714
      %v716 = vsub.f32 %v707, %v712
      %v717 = vsub.f32 %v708, %v715
      %v718 = vmul.f32 %v716, 1.442695
      %v719 = vpow.pop %v718
      %v720 = vmul.f32 %v717, 1.442695
      %v721 = vpow.pop %v720
      %v722 = vsel %vm709, %v719, 0.0
      %723 = vadd.xlane.f32.xlu0 %v722
      %v724 = vpop.xlane.xlu0 %723
      %v725 = vsel %vm709, %v721, 0.0
      %726 = vadd.xlane.f32.xlu0 %v725
      %v727 = vpop.xlane.xlu0 %726
      %v728 = vrcp.pop %v724
      %v729 = vmul.f32 %v719, %v728
      %v730 = vrcp.pop %v727
      %v731 = vmul.f32 %v721, %v730
      %732 = vrot.lane.b32.xlu0 %v539, 64
      %v733 = vpop.permute.xlu0 %732
      %v736 = vsel %vm709, %v729, 0
      %738 = vmatprep.subr.mxu0 0.0
      %739 = vmatpush1.msra.mxu0 %v733
      %740 = vmatprep.subr.mxu0 0.0
      %741 = vmatpush1.msra.mxu0 0.0
      %742 = vmatprep.subr.mxu0 0.0
      %743 = vmatpush1.msra.mxu0 0.0
      %744 = vmatprep.subr.mxu0 0.0
      %745 = vmatpush1.msra.mxu0 0.0
      %746 = vmatprep.subr.mxu0 0.0
      %747 = vmatpush1.msra.mxu0 0.0
      %748 = vmatprep.subr.mxu0 0.0
      %749 = vmatpush1.msra.mxu0 0.0
      %750 = vmatprep.subr.mxu0 0.0
      %751 = vmatpush1.msra.mxu0 0.0
      %752 = vmatprep.subr.mxu0 0.0
      %753 = vmatpush1.msra.mxu0 0.0
      %754 = vmatprep.subr.mxu0 0.0
      %755 = vmatpush1.msra.mxu0 0.0
      %756 = vmatprep.subr.mxu0 0.0
      %757 = vmatpush1.msra.mxu0 0.0
      %758 = vmatprep.subr.mxu0 0.0
      %759 = vmatpush1.msra.mxu0 0.0
      %760 = vmatprep.subr.mxu0 0.0
      %761 = vmatpush1.msra.mxu0 0.0
      %762 = vmatprep.subr.mxu0 0.0
      %763 = vmatpush1.msra.mxu0 0.0
      %764 = vmatprep.subr.mxu0 0.0
      %765 = vmatpush1.msra.mxu0 0.0
      %766 = vmatprep.subr.mxu0 0.0
      %767 = vmatpush1.msra.mxu0 0.0
      %768 = vmatprep.subr.mxu0 0.0
      %769 = vmatpush1.msra.mxu0 0.0
      %770 = vmatprep.subr.mxu0 0.0
      %771 = vmatpush1.msra.mxu0 0.0
      %772 = vmatprep.subr.mxu0 0.0
      %773 = vmatpush1.msra.mxu0 0.0
      %774 = vmatprep.subr.mxu0 0.0
      %775 = vmatpush1.msra.mxu0 0.0
      %776 = vmatprep.subr.mxu0 0.0
      %777 = vmatpush1.msra.mxu0 0.0
      %778 = vmatprep.subr.mxu0 0.0
      %779 = vmatpush1.msra.mxu0 0.0
      %780 = vmatprep.subr.mxu0 0.0
      %781 = vmatpush1.msra.mxu0 0.0
      %782 = vmatprep.subr.mxu0 0.0
      %783 = vmatpush1.msra.mxu0 0.0
      %784 = vmatprep.subr.mxu0 0.0
      %785 = vmatpush1.msra.mxu0 0.0
      %786 = vmatprep.subr.mxu0 0.0
      %787 = vmatpush1.msra.mxu0 0.0
      %788 = vmatprep.subr.mxu0 0.0
      %789 = vmatpush1.msra.mxu0 0.0
      %790 = vmatprep.subr.mxu0 0.0
      %791 = vmatpush1.msra.mxu0 0.0
      %792 = vmatprep.subr.mxu0 0.0
      %793 = vmatpush1.msra.mxu0 0.0
      %794 = vmatprep.subr.mxu0 0.0
      %795 = vmatpush1.msra.mxu0 0.0
      %796 = vmatprep.subr.mxu0 0.0
      %797 = vmatpush1.msra.mxu0 0.0
      %798 = vmatprep.subr.mxu0 0.0
      %799 = vmatpush1.msra.mxu0 0.0
      %800 = vmatprep.subr.mxu0 0.0
      %801 = vmatpush1.msra.mxu0 0.0
      %802 = vmatprep.mubr.f32.mxu0 0.0
      %803 = vmatmul.mubr.f32.gmra.mrb[0].mxu0 %v736
      %v804 = vpop.f32.mrb[0].mxu0
      %v805 = vadd.f32 0.0, %v804
      %v806 = vpop.f32.mrb[0].mxu0
      %807 = vdwg.mxu0
      %808 = vrot.lane.b32.xlu0 %v544, 64
      %v809 = vpop.permute.xlu0 %808
      %v812 = vsel %vm709, %v731, 0
      %814 = vmatprep.subr.mxu0 0.0
      %815 = vmatpush1.msra.mxu0 %v809
      %816 = vmatprep.subr.mxu0 0.0
      %817 = vmatpush1.msra.mxu0 0.0
      %818 = vmatprep.subr.mxu0 0.0
      %819 = vmatpush1.msra.mxu0 0.0
      %820 = vmatprep.subr.mxu0 0.0
      %821 = vmatpush1.msra.mxu0 0.0
      %822 = vmatprep.subr.mxu0 0.0
      %823 = vmatpush1.msra.mxu0 0.0
      %824 = vmatprep.subr.mxu0 0.0
      %825 = vmatpush1.msra.mxu0 0.0
      %826 = vmatprep.subr.mxu0 0.0
      %827 = vmatpush1.msra.mxu0 0.0
      %828 = vmatprep.subr.mxu0 0.0
      %829 = vmatpush1.msra.mxu0 0.0
      %830 = vmatprep.subr.mxu0 0.0
      %831 = vmatpush1.msra.mxu0 0.0
      %832 = vmatprep.subr.mxu0 0.0
      %833 = vmatpush1.msra.mxu0 0.0
      %834 = vmatprep.subr.mxu0 0.0
      %835 = vmatpush1.msra.mxu0 0.0
      %836 = vmatprep.subr.mxu0 0.0
      %837 = vmatpush1.msra.mxu0 0.0
      %838 = vmatprep.subr.mxu0 0.0
      %839 = vmatpush1.msra.mxu0 0.0
      %840 = vmatprep.subr.mxu0 0.0
      %841 = vmatpush1.msra.mxu0 0.0
      %842 = vmatprep.subr.mxu0 0.0
      %843 = vmatpush1.msra.mxu0 0.0
      %844 = vmatprep.subr.mxu0 0.0
      %845 = vmatpush1.msra.mxu0 0.0
      %846 = vmatprep.subr.mxu0 0.0
      %847 = vmatpush1.msra.mxu0 0.0
      %848 = vmatprep.subr.mxu0 0.0
      %849 = vmatpush1.msra.mxu0 0.0
      %850 = vmatprep.subr.mxu0 0.0
      %851 = vmatpush1.msra.mxu0 0.0
      %852 = vmatprep.subr.mxu0 0.0
      %853 = vmatpush1.msra.mxu0 0.0
      %854 = vmatprep.subr.mxu0 0.0
      %855 = vmatpush1.msra.mxu0 0.0
      %856 = vmatprep.subr.mxu0 0.0
      %857 = vmatpush1.msra.mxu0 0.0
      %858 = vmatprep.subr.mxu0 0.0
      %859 = vmatpush1.msra.mxu0 0.0
      %860 = vmatprep.subr.mxu0 0.0
      %861 = vmatpush1.msra.mxu0 0.0
      %862 = vmatprep.subr.mxu0 0.0
      %863 = vmatpush1.msra.mxu0 0.0
      %864 = vmatprep.subr.mxu0 0.0
      %865 = vmatpush1.msra.mxu0 0.0
      %866 = vmatprep.subr.mxu0 0.0
      %867 = vmatpush1.msra.mxu0 0.0
      %868 = vmatprep.subr.mxu0 0.0
      %869 = vmatpush1.msra.mxu0 0.0
      %870 = vmatprep.subr.mxu0 0.0
      %871 = vmatpush1.msra.mxu0 0.0
      %872 = vmatprep.subr.mxu0 0.0
      %873 = vmatpush1.msra.mxu0 0.0
      %874 = vmatprep.subr.mxu0 0.0
      %875 = vmatpush1.msra.mxu0 0.0
      %876 = vmatprep.subr.mxu0 0.0
      %877 = vmatpush1.msra.mxu0 0.0
      %878 = vmatprep.mubr.f32.mxu0 0.0
      %879 = vmatmul.mubr.f32.gmra.mrb[0].mxu0 %v812
      %v880 = vpop.f32.mrb[0].mxu0
      %v881 = vadd.f32 0.0, %v880
      %v882 = vpop.f32.mrb[0].mxu0
      %883 = vdwg.mxu0
      %885 = vrot.lane.b32.xlu0 %v881, 16
      %v886 = vpop.permute.xlu0 %885
      %v888 = vsel %vm547, %v805, %v886
      %v889 = vld [vmem:[%s6] sm:$0xff]
      %v890 = vld [vmem:[%s6 + $0x8] sm:$0xff]
      %v891 = vld [vmem:[%s6 + $0x10] sm:$0xff]
      %v892 = vld [vmem:[%s6 + $0x18] sm:$0xff]
      %v893 = vld [vmem:[%s7] sm:$0x1]
      %v895 = vlaneseq
      %v896 = vshrl.u32 %v895, 7
      %v897 = vsub.s32 0, %v896
      %v898 = vrot.slane %v893, %v897
      %v901 = vsel %vm433, %v888, 0
      %903 = vmatprep.subr.mxu0 0.0
      %904 = vmatpush1.msra.mxu0 %v889
      %905 = vmatprep.subr.mxu0 0.0
      %906 = vmatpush1.msra.mxu0 %v890
      %907 = vmatprep.subr.mxu0 0.0
      %908 = vmatpush1.msra.mxu0 %v891
      %909 = vmatprep.subr.mxu0 0.0
      %910 = vmatpush1.msra.mxu0 %v892
      %911 = vmatprep.subr.mxu0 0.0
      %912 = vmatpush1.msra.mxu0 0.0
      %913 = vmatprep.subr.mxu0 0.0
      %914 = vmatpush1.msra.mxu0 0.0
      %915 = vmatprep.subr.mxu0 0.0
      %916 = vmatpush1.msra.mxu0 0.0
      %917 = vmatprep.subr.mxu0 0.0
      %918 = vmatpush1.msra.mxu0 0.0
      %919 = vmatprep.subr.mxu0 0.0
      %920 = vmatpush1.msra.mxu0 0.0
      %921 = vmatprep.subr.mxu0 0.0
      %922 = vmatpush1.msra.mxu0 0.0
      %923 = vmatprep.subr.mxu0 0.0
      %924 = vmatpush1.msra.mxu0 0.0
      %925 = vmatprep.subr.mxu0 0.0
      %926 = vmatpush1.msra.mxu0 0.0
      %927 = vmatprep.subr.mxu0 0.0
      %928 = vmatpush1.msra.mxu0 0.0
      %929 = vmatprep.subr.mxu0 0.0
      %930 = vmatpush1.msra.mxu0 0.0
      %931 = vmatprep.subr.mxu0 0.0
      %932 = vmatpush1.msra.mxu0 0.0
      %933 = vmatprep.subr.mxu0 0.0
      %934 = vmatpush1.msra.mxu0 0.0
      %935 = vmatprep.subr.mxu0 0.0
      %936 = vmatpush1.msra.mxu0 0.0
      %937 = vmatprep.subr.mxu0 0.0
      %938 = vmatpush1.msra.mxu0 0.0
      %939 = vmatprep.subr.mxu0 0.0
      %940 = vmatpush1.msra.mxu0 0.0
      %941 = vmatprep.subr.mxu0 0.0
      %942 = vmatpush1.msra.mxu0 0.0
      %943 = vmatprep.subr.mxu0 0.0
      %944 = vmatpush1.msra.mxu0 0.0
      %945 = vmatprep.subr.mxu0 0.0
      %946 = vmatpush1.msra.mxu0 0.0
      %947 = vmatprep.subr.mxu0 0.0
      %948 = vmatpush1.msra.mxu0 0.0
      %949 = vmatprep.subr.mxu0 0.0
      %950 = vmatpush1.msra.mxu0 0.0
      %951 = vmatprep.subr.mxu0 0.0
      %952 = vmatpush1.msra.mxu0 0.0
      %953 = vmatprep.subr.mxu0 0.0
      %954 = vmatpush1.msra.mxu0 0.0
      %955 = vmatprep.subr.mxu0 0.0
      %956 = vmatpush1.msra.mxu0 0.0
      %957 = vmatprep.subr.mxu0 0.0
      %958 = vmatpush1.msra.mxu0 0.0
      %959 = vmatprep.subr.mxu0 0.0
      %960 = vmatpush1.msra.mxu0 0.0
      %961 = vmatprep.subr.mxu0 0.0
      %962 = vmatpush1.msra.mxu0 0.0
      %963 = vmatprep.subr.mxu0 0.0
      %964 = vmatpush1.msra.mxu0 0.0
      %965 = vmatprep.subr.mxu0 0.0
      %966 = vmatpush1.msra.mxu0 0.0
      %967 = vmatprep.mubr.f32.mxu0 0.0
      %968 = vmatmul.mubr.f32.gmra.mrb[0].mxu0 %v901
      %v969 = vpop.f32.mrb[0].mxu0
      %v970 = vadd.f32 %v898, %v969
      %v971 = vpop.f32.mrb[0].mxu0
      %972 = vdwg.mxu0
      %v973 = vld [vmem:[%s8] sm:$0xf]
      %v974 = vadd.f32 %v457, %v970
      %v975 = vsel %vm433, %v974, 0.0
      %976 = vadd.xlane.f32.xlu0 %v975
      %v977 = vpop.xlane.xlu0 %976
      %v978 = vmul.f32 %v977, %v437
      %v979 = vsub.f32 %v974, %v978
      %v980 = vmul.f32 %v979, %v979
      %v981 = vsel %vm433, %v980, 0.0
      %982 = vadd.xlane.f32.xlu0 %v981
      %v983 = vpop.xlane.xlu0 %982
      %v984 = vmul.f32 %v983, %v437
      %v985 = vadd.f32 %v984, 1e-12
      %v986 = vrsqrt.pop %v985
      %v987 = vmul.f32 %v979, %v986
      %v988 = vlaneseq
      %v989 = vshrl.u32 %v988, 7
      %v990 = vsub.s32 0, %v989
      %v991 = vrot.slane %v973, %v990
      %v992 = vmul.f32 %v987, %v991
      %v993 = vlaneseq
      %v994 = vshrl.u32 %v993, 7
      %v995 = vsub.s32 1, %v994
      %v996 = vrot.slane %v973, %v995
      %v997 = vadd.f32 %v992, %v996
      %v998 = vld [vmem:[%s9] sm:$0xff]
      %v999 = vld [vmem:[%s9 + $0x8] sm:$0xff]
      %v1000 = vld [vmem:[%s9 + $0x10] sm:$0xff]
      %v1001 = vld [vmem:[%s9 + $0x18] sm:$0xff]
      %v1002 = vld [vmem:[%s10] sm:$0x1]
      %v1004 = vlaneseq
      %v1005 = vshrl.u32 %v1004, 7
      %v1006 = vsub.s32 0, %v1005
      %v1007 = vrot.slane %v1002, %v1006
      %v1010 = vsel %vm433, %v997, 0
      %1012 = vmatprep.subr.mxu0 0.0
      %1013 = vmatpush1.msra.mxu0 %v998
      %1014 = vmatprep.subr.mxu0 0.0
      %1015 = vmatpush1.msra.mxu0 %v999
      %1016 = vmatprep.subr.mxu0 0.0
      %1017 = vmatpush1.msra.mxu0 %v1000
      %1018 = vmatprep.subr.mxu0 0.0
      %1019 = vmatpush1.msra.mxu0 %v1001
      %1020 = vmatprep.subr.mxu0 0.0
      %1021 = vmatpush1.msra.mxu0 0.0
      %1022 = vmatprep.subr.mxu0 0.0
      %1023 = vmatpush1.msra.mxu0 0.0
      %1024 = vmatprep.subr.mxu0 0.0
      %1025 = vmatpush1.msra.mxu0 0.0
      %1026 = vmatprep.subr.mxu0 0.0
      %1027 = vmatpush1.msra.mxu0 0.0
      %1028 = vmatprep.subr.mxu0 0.0
      %1029 = vmatpush1.msra.mxu0 0.0
      %1030 = vmatprep.subr.mxu0 0.0
      %1031 = vmatpush1.msra.mxu0 0.0
      %1032 = vmatprep.subr.mxu0 0.0
      %1033 = vmatpush1.msra.mxu0 0.0
      %1034 = vmatprep.subr.mxu0 0.0
      %1035 = vmatpush1.msra.mxu0 0.0
      %1036 = vmatprep.subr.mxu0 0.0
      %1037 = vmatpush1.msra.mxu0 0.0
      %1038 = vmatprep.subr.mxu0 0.0
      %1039 = vmatpush1.msra.mxu0 0.0
      %1040 = vmatprep.subr.mxu0 0.0
      %1041 = vmatpush1.msra.mxu0 0.0
      %1042 = vmatprep.subr.mxu0 0.0
      %1043 = vmatpush1.msra.mxu0 0.0
      %1044 = vmatprep.subr.mxu0 0.0
      %1045 = vmatpush1.msra.mxu0 0.0
      %1046 = vmatprep.subr.mxu0 0.0
      %1047 = vmatpush1.msra.mxu0 0.0
      %1048 = vmatprep.subr.mxu0 0.0
      %1049 = vmatpush1.msra.mxu0 0.0
      %1050 = vmatprep.subr.mxu0 0.0
      %1051 = vmatpush1.msra.mxu0 0.0
      %1052 = vmatprep.subr.mxu0 0.0
      %1053 = vmatpush1.msra.mxu0 0.0
      %1054 = vmatprep.subr.mxu0 0.0
      %1055 = vmatpush1.msra.mxu0 0.0
      %1056 = vmatprep.subr.mxu0 0.0
      %1057 = vmatpush1.msra.mxu0 0.0
      %1058 = vmatprep.subr.mxu0 0.0
      %1059 = vmatpush1.msra.mxu0 0.0
      %1060 = vmatprep.subr.mxu0 0.0
      %1061 = vmatpush1.msra.mxu0 0.0
      %1062 = vmatprep.subr.mxu0 0.0
      %1063 = vmatpush1.msra.mxu0 0.0
      %1064 = vmatprep.subr.mxu0 0.0
      %1065 = vmatpush1.msra.mxu0 0.0
      %1066 = vmatprep.subr.mxu0 0.0
      %1067 = vmatpush1.msra.mxu0 0.0
      %1068 = vmatprep.subr.mxu0 0.0
      %1069 = vmatpush1.msra.mxu0 0.0
      %1070 = vmatprep.subr.mxu0 0.0
      %1071 = vmatpush1.msra.mxu0 0.0
      %1072 = vmatprep.subr.mxu0 0.0
      %1073 = vmatpush1.msra.mxu0 0.0
      %1074 = vmatprep.subr.mxu0 0.0
      %1075 = vmatpush1.msra.mxu0 0.0
      %1076 = vmatprep.mubr.f32.mxu0 0.0
      %1077 = vmatmul.mubr.f32.gmra.mrb[0].mxu0 %v1010
      %v1078 = vpop.f32.mrb[0].mxu0
      %v1079 = vadd.f32 %v1007, %v1078
      %v1080 = vpop.f32.mrb[0].mxu0
      %1081 = vdwg.mxu0
      %v1082 = vmul.f32 %v1079, %v1079
      %v1083 = vmul.f32 %v1079, %v1082
      %v1084 = vmul.f32 %v1083, 0.044715
      %v1085 = vadd.f32 %v1079, %v1084
      %v1086 = vmul.f32 %v1085, 0.7978846
      %v1087 = vtanh.pop %v1086
      %v1088 = vadd.f32 %v1087, 1.0
      %v1089 = vmul.f32 %v1088, 0.5
      %v1090 = vmul.f32 %v1079, %v1089
      %v1091 = vld [vmem:[%s11] sm:$0xff]
      %v1092 = vld [vmem:[%s11 + $0x8] sm:$0xff]
      %v1093 = vld [vmem:[%s11 + $0x10] sm:$0xff]
      %v1094 = vld [vmem:[%s11 + $0x18] sm:$0xff]
      %v1095 = vld [vmem:[%s11 + $0x20] sm:$0xff]
      %v1096 = vld [vmem:[%s11 + $0x28] sm:$0xff]
      %v1097 = vld [vmem:[%s11 + $0x30] sm:$0xff]
      %v1098 = vld [vmem:[%s11 + $0x38] sm:$0xff]
      %v1099 = vld [vmem:[%s12] sm:$0x1]
      %v1101 = vlaneseq
      %v1102 = vshrl.u32 %v1101, 7
      %v1103 = vsub.s32 0, %v1102
      %v1104 = vrot.slane %v1099, %v1103
      %vm1106 = vcmask 523264
      %v1108 = vsel %vm1106, %v1090, 0
      %1110 = vmatprep.subr.mxu0 0.0
      %1111 = vmatpush1.msra.mxu0 %v1091
      %1112 = vmatprep.subr.mxu0 0.0
      %1113 = vmatpush1.msra.mxu0 %v1092
      %1114 = vmatprep.subr.mxu0 0.0
      %1115 = vmatpush1.msra.mxu0 %v1093
      %1116 = vmatprep.subr.mxu0 0.0
      %1117 = vmatpush1.msra.mxu0 %v1094
      %1118 = vmatprep.subr.mxu0 0.0
      %1119 = vmatpush1.msra.mxu0 %v1095
      %1120 = vmatprep.subr.mxu0 0.0
      %1121 = vmatpush1.msra.mxu0 %v1096
      %1122 = vmatprep.subr.mxu0 0.0
      %1123 = vmatpush1.msra.mxu0 %v1097
      %1124 = vmatprep.subr.mxu0 0.0
      %1125 = vmatpush1.msra.mxu0 %v1098
      %1126 = vmatprep.subr.mxu0 0.0
      %1127 = vmatpush1.msra.mxu0 0.0
      %1128 = vmatprep.subr.mxu0 0.0
      %1129 = vmatpush1.msra.mxu0 0.0
      %1130 = vmatprep.subr.mxu0 0.0
      %1131 = vmatpush1.msra.mxu0 0.0
      %1132 = vmatprep.subr.mxu0 0.0
      %1133 = vmatpush1.msra.mxu0 0.0
      %1134 = vmatprep.subr.mxu0 0.0
      %1135 = vmatpush1.msra.mxu0 0.0
      %1136 = vmatprep.subr.mxu0 0.0
      %1137 = vmatpush1.msra.mxu0 0.0
      %1138 = vmatprep.subr.mxu0 0.0
      %1139 = vmatpush1.msra.mxu0 0.0
      %1140 = vmatprep.subr.mxu0 0.0
      %1141 = vmatpush1.msra.mxu0 0.0
      %1142 = vmatprep.subr.mxu0 0.0
      %1143 = vmatpush1.msra.mxu0 0.0
      %1144 = vmatprep.subr.mxu0 0.0
      %1145 = vmatpush1.msra.mxu0 0.0
      %1146 = vmatprep.subr.mxu0 0.0
      %1147 = vmatpush1.msra.mxu0 0.0
      %1148 = vmatprep.subr.mxu0 0.0
      %1149 = vmatpush1.msra.mxu0 0.0
      %1150 = vmatprep.subr.mxu0 0.0
      %1151 = vmatpush1.msra.mxu0 0.0
      %1152 = vmatprep.subr.mxu0 0.0
      %1153 = vmatpush1.msra.mxu0 0.0
      %1154 = vmatprep.subr.mxu0 0.0
      %1155 = vmatpush1.msra.mxu0 0.0
      %1156 = vmatprep.subr.mxu0 0.0
      %1157 = vmatpush1.msra.mxu0 0.0
      %1158 = vmatprep.subr.mxu0 0.0
      %1159 = vmatpush1.msra.mxu0 0.0
      %1160 = vmatprep.subr.mxu0 0.0
      %1161 = vmatpush1.msra.mxu0 0.0
      %1162 = vmatprep.subr.mxu0 0.0
      %1163 = vmatpush1.msra.mxu0 0.0
      %1164 = vmatprep.subr.mxu0 0.0
      %1165 = vmatpush1.msra.mxu0 0.0
      %1166 = vmatprep.subr.mxu0 0.0
      %1167 = vmatpush1.msra.mxu0 0.0
      %1168 = vmatprep.subr.mxu0 0.0
      %1169 = vmatpush1.msra.mxu0 0.0
      %1170 = vmatprep.subr.mxu0 0.0
      %1171 = vmatpush1.msra.mxu0 0.0
      %1172 = vmatprep.subr.mxu0 0.0
      %1173 = vmatpush1.msra.mxu0 0.0
      %1174 = vmatprep.mubr.f32.mxu0 0.0
      %1175 = vmatmul.mubr.f32.gmra.mrb[0].mxu0 %v1108
      %v1176 = vpop.f32.mrb[0].mxu0
      %v1177 = vadd.f32 %v1104, %v1176
      %v1178 = vpop.f32.mrb[0].mxu0
      %1179 = vdwg.mxu0
      %v1180 = vadd.f32 %v997, %v1177
      %v1181 = vsel %vm433, %v1180, 0.0
      %1182 = vadd.xlane.f32.xlu0 %v1181
      %v1183 = vpop.xlane.xlu0 %1182
      %v1184 = vmul.f32 %v1183, %v437
      %v1185 = vsub.f32 %v1180, %v1184
      %v1186 = vmul.f32 %v1185, %v1185
      %v1187 = vsel %vm433, %v1186, 0.0
      %1188 = vadd.xlane.f32.xlu0 %v1187
      %v1189 = vpop.xlane.xlu0 %1188
      %v1190 = vmul.f32 %v1189, %v437
      %v1191 = vadd.f32 %v1190, 1e-12
      %v1192 = vrsqrt.pop %v1191
      %v1193 = vmul.f32 %v1185, %v1192
      %v1194 = vlaneseq
      %v1195 = vshrl.u32 %v1194, 7
      %v1196 = vsub.s32 2, %v1195
      %v1197 = vrot.slane %v973, %v1196
      %v1198 = vmul.f32 %v1193, %v1197
      %v1199 = vlaneseq
      %v1200 = vshrl.u32 %v1199, 7
      %v1201 = vsub.s32 3, %v1200
      %v1202 = vrot.slane %v973, %v1201
      %v1203 = vadd.f32 %v1198, %v1202
      %s1204 = scalar_lea.vmem %s4, 32
      %v1205 = vld [vmem:[%s1204] sm:$0xff]
      %v1206 = vld [vmem:[%s1204 + $0x8] sm:$0xff]
      %v1207 = vld [vmem:[%s1204 + $0x10] sm:$0xff]
      %v1208 = vld [vmem:[%s1204 + $0x18] sm:$0xff]
      %s1209 = scalar_lea.vmem %s5, 1
      %v1210 = vld [vmem:[%s1209] sm:$0x1]
      %v1212 = vlaneseq
      %v1213 = vshrl.u32 %v1212, 7
      %v1214 = vsub.s32 0, %v1213
      %v1215 = vrot.slane %v1210, %v1214
      %v1218 = vsel %vm433, %v1203, 0
      %1220 = vmatprep.subr.mxu0 0.0
      %1221 = vmatpush1.msra.mxu0 %v1205
      %1222 = vmatprep.subr.mxu0 0.0
      %1223 = vmatpush1.msra.mxu0 %v1206
      %1224 = vmatprep.subr.mxu0 0.0
      %1225 = vmatpush1.msra.mxu0 %v1207
      %1226 = vmatprep.subr.mxu0 0.0
      %1227 = vmatpush1.msra.mxu0 %v1208
      %1228 = vmatprep.subr.mxu0 0.0
      %1229 = vmatpush1.msra.mxu0 0.0
      %1230 = vmatprep.subr.mxu0 0.0
      %1231 = vmatpush1.msra.mxu0 0.0
      %1232 = vmatprep.subr.mxu0 0.0
      %1233 = vmatpush1.msra.mxu0 0.0
      %1234 = vmatprep.subr.mxu0 0.0
      %1235 = vmatpush1.msra.mxu0 0.0
      %1236 = vmatprep.subr.mxu0 0.0
      %1237 = vmatpush1.msra.mxu0 0.0
      %1238 = vmatprep.subr.mxu0 0.0
      %1239 = vmatpush1.msra.mxu0 0.0
      %1240 = vmatprep.subr.mxu0 0.0
      %1241 = vmatpush1.msra.mxu0 0.0
      %1242 = vmatprep.subr.mxu0 0.0
      %1243 = vmatpush1.msra.mxu0 0.0
      %1244 = vmatprep.subr.mxu0 0.0
      %1245 = vmatpush1.msra.mxu0 0.0
      %1246 = vmatprep.subr.mxu0 0.0
      %1247 = vmatpush1.msra.mxu0 0.0
      %1248 = vmatprep.subr.mxu0 0.0
      %1249 = vmatpush1.msra.mxu0 0.0
      %1250 = vmatprep.subr.mxu0 0.0
      %1251 = vmatpush1.msra.mxu0 0.0
      %1252 = vmatprep.subr.mxu0 0.0
      %1253 = vmatpush1.msra.mxu0 0.0
      %1254 = vmatprep.subr.mxu0 0.0
      %1255 = vmatpush1.msra.mxu0 0.0
      %1256 = vmatprep.subr.mxu0 0.0
      %1257 = vmatpush1.msra.mxu0 0.0
      %1258 = vmatprep.subr.mxu0 0.0
      %1259 = vmatpush1.msra.mxu0 0.0
      %1260 = vmatprep.subr.mxu0 0.0
      %1261 = vmatpush1.msra.mxu0 0.0
      %1262 = vmatprep.subr.mxu0 0.0
      %1263 = vmatpush1.msra.mxu0 0.0
      %1264 = vmatprep.subr.mxu0 0.0
      %1265 = vmatpush1.msra.mxu0 0.0
      %1266 = vmatprep.subr.mxu0 0.0
      %1267 = vmatpush1.msra.mxu0 0.0
      %1268 = vmatprep.subr.mxu0 0.0
      %1269 = vmatpush1.msra.mxu0 0.0
      %1270 = vmatprep.subr.mxu0 0.0
      %1271 = vmatpush1.msra.mxu0 0.0
      %1272 = vmatprep.subr.mxu0 0.0
      %1273 = vmatpush1.msra.mxu0 0.0
      %1274 = vmatprep.subr.mxu0 0.0
      %1275 = vmatpush1.msra.mxu0 0.0
      %1276 = vmatprep.subr.mxu0 0.0
      %1277 = vmatpush1.msra.mxu0 0.0
      %1278 = vmatprep.subr.mxu0 0.0
      %1279 = vmatpush1.msra.mxu0 0.0
      %1280 = vmatprep.subr.mxu0 0.0
      %1281 = vmatpush1.msra.mxu0 0.0
      %1282 = vmatprep.subr.mxu0 0.0
      %1283 = vmatpush1.msra.mxu0 0.0
      %1284 = vmatprep.mubr.f32.mxu0 0.0
      %1285 = vmatmul.mubr.f32.gmra.mrb[0].mxu0 %v1218
      %v1286 = vpop.f32.mrb[0].mxu0
      %v1287 = vadd.f32 %v1215, %v1286
      %v1288 = vpop.f32.mrb[0].mxu0
      %1289 = vdwg.mxu0
      %1291 = vrot.lane.b32.xlu0 %v1287, 112
      %v1292 = vpop.permute.xlu0 %1291
      %1293 = vrot.lane.b32.xlu0 %v1287, 96
      %v1294 = vpop.permute.xlu0 %1293
      %v1295 = vsel %vm547, %v1287, 0
      %v1297 = vsel %vm547, %v1294, 0
      %1299 = vmatprep.subr.mxu0 0.0
      %1300 = vmatpush1.xpose.msra.mxu0 %v1297
      %1301 = vmatprep.subr.mxu0 0.0
      %1302 = vmatpush1.xpose.msra.mxu0 0.0
      %1303 = vmatprep.subr.mxu0 0.0
      %1304 = vmatpush1.xpose.msra.mxu0 0.0
      %1305 = vmatprep.subr.mxu0 0.0
      %1306 = vmatpush1.xpose.msra.mxu0 0.0
      %1307 = vmatprep.subr.mxu0 0.0
      %1308 = vmatpush1.xpose.msra.mxu0 0.0
      %1309 = vmatprep.subr.mxu0 0.0
      %1310 = vmatpush1.xpose.msra.mxu0 0.0
      %1311 = vmatprep.subr.mxu0 0.0
      %1312 = vmatpush1.xpose.msra.mxu0 0.0
      %1313 = vmatprep.subr.mxu0 0.0
      %1314 = vmatpush1.xpose.msra.mxu0 0.0
      %1315 = vmatprep.subr.mxu0 0.0
      %1316 = vmatpush1.xpose.msra.mxu0 0.0
      %1317 = vmatprep.subr.mxu0 0.0
      %1318 = vmatpush1.xpose.msra.mxu0 0.0
      %1319 = vmatprep.subr.mxu0 0.0
      %1320 = vmatpush1.xpose.msra.mxu0 0.0
      %1321 = vmatprep.subr.mxu0 0.0
      %1322 = vmatpush1.xpose.msra.mxu0 0.0
      %1323 = vmatprep.subr.mxu0 0.0
      %1324 = vmatpush1.xpose.msra.mxu0 0.0
      %1325 = vmatprep.subr.mxu0 0.0
      %1326 = vmatpush1.xpose.msra.mxu0 0.0
      %1327 = vmatprep.subr.mxu0 0.0
      %1328 = vmatpush1.xpose.msra.mxu0 0.0
      %1329 = vmatprep.subr.mxu0 0.0
      %1330 = vmatpush1.xpose.msra.mxu0 0.0
      %1331 = vmatprep.subr.mxu0 0.0
      %1332 = vmatpush1.xpose.msra.mxu0 0.0
      %1333 = vmatprep.subr.mxu0 0.0
      %1334 = vmatpush1.xpose.msra.mxu0 0.0
      %1335 = vmatprep.subr.mxu0 0.0
      %1336 = vmatpush1.xpose.msra.mxu0 0.0
      %1337 = vmatprep.subr.mxu0 0.0
      %1338 = vmatpush1.xpose.msra.mxu0 0.0
      %1339 = vmatprep.subr.mxu0 0.0
      %1340 = vmatpush1.xpose.msra.mxu0 0.0
      %1341 = vmatprep.subr.mxu0 0.0
      %1342 = vmatpush1.xpose.msra.mxu0 0.0
      %1343 = vmatprep.subr.mxu0 0.0
      %1344 = vmatpush1.xpose.msra.mxu0 0.0
      %1345 = vmatprep.subr.mxu0 0.0
      %1346 = vmatpush1.xpose.msra.mxu0 0.0
      %1347 = vmatprep.subr.mxu0 0.0
      %1348 = vmatpush1.xpose.msra.mxu0 0.0
      %1349 = vmatprep.subr.mxu0 0.0
      %1350 = vmatpush1.xpose.msra.mxu0 0.0
      %1351 = vmatprep.subr.mxu0 0.0
      %1352 = vmatpush1.xpose.msra.mxu0 0.0
      %1353 = vmatprep.subr.mxu0 0.0
      %1354 = vmatpush1.xpose.msra.mxu0 0.0
      %1355 = vmatprep.subr.mxu0 0.0
      %1356 = vmatpush1.xpose.msra.mxu0 0.0
      %1357 = vmatprep.subr.mxu0 0.0
      %1358 = vmatpush1.xpose.msra.mxu0 0.0
      %1359 = vmatprep.subr.mxu0 0.0
      %1360 = vmatpush1.xpose.msra.mxu0 0.0
      %1361 = vmatprep.subr.mxu0 0.0
      %1362 = vmatpush1.xpose.msra.mxu0 0.0
      %1363 = vmatprep.mubr.f32.mxu0 0.0
      %1364 = vmatmul.mubr.f32.gmra.mrb[0].mxu0 %v1295
      %v1365 = vpop.f32.mrb[0].mxu0
      %v1366 = vadd.f32 0.0, %v1365
      %v1367 = vpop.f32.mrb[0].mxu0
      %1368 = vdwg.mxu0
      %1369 = vrot.lane.b32.xlu0 %v1292, 96
      %v1370 = vpop.permute.xlu0 %1369
      %v1371 = vsel %vm547, %v1292, 0
      %v1373 = vsel %vm547, %v1370, 0
      %1375 = vmatprep.subr.mxu0 0.0
      %1376 = vmatpush1.xpose.msra.mxu0 %v1373
      %1377 = vmatprep.subr.mxu0 0.0
      %1378 = vmatpush1.xpose.msra.mxu0 0.0
      %1379 = vmatprep.subr.mxu0 0.0
      %1380 = vmatpush1.xpose.msra.mxu0 0.0
      %1381 = vmatprep.subr.mxu0 0.0
      %1382 = vmatpush1.xpose.msra.mxu0 0.0
      %1383 = vmatprep.subr.mxu0 0.0
      %1384 = vmatpush1.xpose.msra.mxu0 0.0
      %1385 = vmatprep.subr.mxu0 0.0
      %1386 = vmatpush1.xpose.msra.mxu0 0.0
      %1387 = vmatprep.subr.mxu0 0.0
      %1388 = vmatpush1.xpose.msra.mxu0 0.0
      %1389 = vmatprep.subr.mxu0 0.0
      %1390 = vmatpush1.xpose.msra.mxu0 0.0
      %1391 = vmatprep.subr.mxu0 0.0
      %1392 = vmatpush1.xpose.msra.mxu0 0.0
      %1393 = vmatprep.subr.mxu0 0.0
      %1394 = vmatpush1.xpose.msra.mxu0 0.0
      %1395 = vmatprep.subr.mxu0 0.0
      %1396 = vmatpush1.xpose.msra.mxu0 0.0
      %1397 = vmatprep.subr.mxu0 0.0
      %1398 = vmatpush1.xpose.msra.mxu0 0.0
      %1399 = vmatprep.subr.mxu0 0.0
      %1400 = vmatpush1.xpose.msra.mxu0 0.0
      %1401 = vmatprep.subr.mxu0 0.0
      %1402 = vmatpush1.xpose.msra.mxu0 0.0
      %1403 = vmatprep.subr.mxu0 0.0
      %1404 = vmatpush1.xpose.msra.mxu0 0.0
      %1405 = vmatprep.subr.mxu0 0.0
      %1406 = vmatpush1.xpose.msra.mxu0 0.0
      %1407 = vmatprep.subr.mxu0 0.0
      %1408 = vmatpush1.xpose.msra.mxu0 0.0
      %1409 = vmatprep.subr.mxu0 0.0
      %1410 = vmatpush1.xpose.msra.mxu0 0.0
      %1411 = vmatprep.subr.mxu0 0.0
      %1412 = vmatpush1.xpose.msra.mxu0 0.0
      %1413 = vmatprep.subr.mxu0 0.0
      %1414 = vmatpush1.xpose.msra.mxu0 0.0
      %1415 = vmatprep.subr.mxu0 0.0
      %1416 = vmatpush1.xpose.msra.mxu0 0.0
      %1417 = vmatprep.subr.mxu0 0.0
      %1418 = vmatpush1.xpose.msra.mxu0 0.0
      %1419 = vmatprep.subr.mxu0 0.0
      %1420 = vmatpush1.xpose.msra.mxu0 0.0
      %1421 = vmatprep.subr.mxu0 0.0
      %1422 = vmatpush1.xpose.msra.mxu0 0.0
      %1423 = vmatprep.subr.mxu0 0.0
      %1424 = vmatpush1.xpose.msra.mxu0 0.0
      %1425 = vmatprep.subr.mxu0 0.0
      %1426 = vmatpush1.xpose.msra.mxu0 0.0
      %1427 = vmatprep.subr.mxu0 0.0
      %1428 = vmatpush1.xpose.msra.mxu0 0.0
      %1429 = vmatprep.subr.mxu0 0.0
      %1430 = vmatpush1.xpose.msra.mxu0 0.0
      %1431 = vmatprep.subr.mxu0 0.0
      %1432 = vmatpush1.xpose.msra.mxu0 0.0
      %1433 = vmatprep.subr.mxu0 0.0
      %1434 = vmatpush1.xpose.msra.mxu0 0.0
      %1435 = vmatprep.subr.mxu0 0.0
      %1436 = vmatpush1.xpose.msra.mxu0 0.0
      %1437 = vmatprep.subr.mxu0 0.0
      %1438 = vmatpush1.xpose.msra.mxu0 0.0
      %1439 = vmatprep.mubr.f32.mxu0 0.0
      %1440 = vmatmul.mubr.f32.gmra.mrb[0].mxu0 %v1371
      %v1441 = vpop.f32.mrb[0].mxu0
      %v1442 = vadd.f32 0.0, %v1441
      %v1443 = vpop.f32.mrb[0].mxu0
      %1444 = vdwg.mxu0
      %v1445 = vmul.f32 %v1366, 0.25
      %v1446 = vmul.f32 %v1442, 0.25
      %v1447 = vld [vmem:[%s425] sm:$0x1]
      %v1449 = vlaneseq
      %v1450 = vshrl.u32 %v1449, 7
      %v1451 = vsub.s32 0, %v1450
      %v1452 = vrot.slane %v1447, %v1451
      %v1454 = vadd.f32 %v1445, %v1452
      %v1455 = vadd.f32 %v1446, %v1452
      %v1456 = vsel %vm709, %v1454, -inf
      %1457 = vmax.xlane.f32.xlu0 %v1456
      %v1458 = vpop.xlane.xlu0 %1457
      %v1459 = vsel %vm709, %v1455, -inf
      %1460 = vmax.xlane.f32.xlu0 %v1459
      %v1461 = vpop.xlane.xlu0 %1460
      %v1462 = vsub.f32 %v1454, %v1458
      %v1463 = vsub.f32 %v1455, %v1461
      %v1464 = vmul.f32 %v1462, 1.442695
      %v1465 = vpow.pop %v1464
      %v1466 = vmul.f32 %v1463, 1.442695
      %v1467 = vpow.pop %v1466
      %v1468 = vsel %vm709, %v1465, 0.0
      %1469 = vadd.xlane.f32.xlu0 %v1468
      %v1470 = vpop.xlane.xlu0 %1469
      %v1471 = vsel %vm709, %v1467, 0.0
      %1472 = vadd.xlane.f32.xlu0 %v1471
      %v1473 = vpop.xlane.xlu0 %1472
      %v1474 = vrcp.pop %v1470
      %v1475 = vmul.f32 %v1465, %v1474
      %v1476 = vrcp.pop %v1473
      %v1477 = vmul.f32 %v1467, %v1476
      %1478 = vrot.lane.b32.xlu0 %v1287, 64
      %v1479 = vpop.permute.xlu0 %1478
      %v1482 = vsel %vm709, %v1475, 0
      %1484 = vmatprep.subr.mxu0 0.0
      %1485 = vmatpush1.msra.mxu0 %v1479
      %1486 = vmatprep.subr.mxu0 0.0
      %1487 = vmatpush1.msra.mxu0 0.0
      %1488 = vmatprep.subr.mxu0 0.0
      %1489 = vmatpush1.msra.mxu0 0.0
      %1490 = vmatprep.subr.mxu0 0.0
      %1491 = vmatpush1.msra.mxu0 0.0
      %1492 = vmatprep.subr.mxu0 0.0
      %1493 = vmatpush1.msra.mxu0 0.0
      %1494 = vmatprep.subr.mxu0 0.0
      %1495 = vmatpush1.msra.mxu0 0.0
      %1496 = vmatprep.subr.mxu0 0.0
      %1497 = vmatpush1.msra.mxu0 0.0
      %1498 = vmatprep.subr.mxu0 0.0
      %1499 = vmatpush1.msra.mxu0 0.0
      %1500 = vmatprep.subr.mxu0 0.0
      %1501 = vmatpush1.msra.mxu0 0.0
      %1502 = vmatprep.subr.mxu0 0.0
      %1503 = vmatpush1.msra.mxu0 0.0
      %1504 = vmatprep.subr.mxu0 0.0
      %1505 = vmatpush1.msra.mxu0 0.0
      %1506 = vmatprep.subr.mxu0 0.0
      %1507 = vmatpush1.msra.mxu0 0.0
      %1508 = vmatprep.subr.mxu0 0.0
      %1509 = vmatpush1.msra.mxu0 0.0
      %1510 = vmatprep.subr.mxu0 0.0
      %1511 = vmatpush1.msra.mxu0 0.0
      %1512 = vmatprep.subr.mxu0 0.0
      %1513 = vmatpush1.msra.mxu0 0.0
      %1514 = vmatprep.subr.mxu0 0.0
      %1515 = vmatpush1.msra.mxu0 0.0
      %1516 = vmatprep.subr.mxu0 0.0
      %1517 = vmatpush1.msra.mxu0 0.0
      %1518 = vmatprep.subr.mxu0 0.0
      %1519 = vmatpush1.msra.mxu0 0.0
      %1520 = vmatprep.subr.mxu0 0.0
      %1521 = vmatpush1.msra.mxu0 0.0
      %1522 = vmatprep.subr.mxu0 0.0
      %1523 = vmatpush1.msra.mxu0 0.0
      %1524 = vmatprep.subr.mxu0 0.0
      %1525 = vmatpush1.msra.mxu0 0.0
      %1526 = vmatprep.subr.mxu0 0.0
      %1527 = vmatpush1.msra.mxu0 0.0
      %1528 = vmatprep.subr.mxu0 0.0
      %1529 = vmatpush1.msra.mxu0 0.0
      %1530 = vmatprep.subr.mxu0 0.0
      %1531 = vmatpush1.msra.mxu0 0.0
      %1532 = vmatprep.subr.mxu0 0.0
      %1533 = vmatpush1.msra.mxu0 0.0
      %1534 = vmatprep.subr.mxu0 0.0
      %1535 = vmatpush1.msra.mxu0 0.0
      %1536 = vmatprep.subr.mxu0 0.0
      %1537 = vmatpush1.msra.mxu0 0.0
      %1538 = vmatprep.subr.mxu0 0.0
      %1539 = vmatpush1.msra.mxu0 0.0
      %1540 = vmatprep.subr.mxu0 0.0
      %1541 = vmatpush1.msra.mxu0 0.0
      %1542 = vmatprep.subr.mxu0 0.0
      %1543 = vmatpush1.msra.mxu0 0.0
      %1544 = vmatprep.subr.mxu0 0.0
      %1545 = vmatpush1.msra.mxu0 0.0
      %1546 = vmatprep.subr.mxu0 0.0
      %1547 = vmatpush1.msra.mxu0 0.0
      %1548 = vmatprep.mubr.f32.mxu0 0.0
      %1549 = vmatmul.mubr.f32.gmra.mrb[0].mxu0 %v1482
      %v1550 = vpop.f32.mrb[0].mxu0
      %v1551 = vadd.f32 0.0, %v1550
      %v1552 = vpop.f32.mrb[0].mxu0
      %1553 = vdwg.mxu0
      %1554 = vrot.lane.b32.xlu0 %v1292, 64
      %v1555 = vpop.permute.xlu0 %1554
      %v1558 = vsel %vm709, %v1477, 0
      %1560 = vmatprep.subr.mxu0 0.0
      %1561 = vmatpush1.msra.mxu0 %v1555
      %1562 = vmatprep.subr.mxu0 0.0
      %1563 = vmatpush1.msra.mxu0 0.0
      %1564 = vmatprep.subr.mxu0 0.0
      %1565 = vmatpush1.msra.mxu0 0.0
      %1566 = vmatprep.subr.mxu0 0.0
      %1567 = vmatpush1.msra.mxu0 0.0
      %1568 = vmatprep.subr.mxu0 0.0
      %1569 = vmatpush1.msra.mxu0 0.0
      %1570 = vmatprep.subr.mxu0 0.0
      %1571 = vmatpush1.msra.mxu0 0.0
      %1572 = vmatprep.subr.mxu0 0.0
      %1573 = vmatpush1.msra.mxu0 0.0
      %1574 = vmatprep.subr.mxu0 0.0
      %1575 = vmatpush1.msra.mxu0 0.0
      %1576 = vmatprep.subr.mxu0 0.0
      %1577 = vmatpush1.msra.mxu0 0.0
      %1578 = vmatprep.subr.mxu0 0.0
      %1579 = vmatpush1.msra.mxu0 0.0
      %1580 = vmatprep.subr.mxu0 0.0
      %1581 = vmatpush1.msra.mxu0 0.0
      %1582 = vmatprep.subr.mxu0 0.0
      %1583 = vmatpush1.msra.mxu0 0.0
      %1584 = vmatprep.subr.mxu0 0.0
      %1585 = vmatpush1.msra.mxu0 0.0
      %1586 = vmatprep.subr.mxu0 0.0
      %1587 = vmatpush1.msra.mxu0 0.0
      %1588 = vmatprep.subr.mxu0 0.0
      %1589 = vmatpush1.msra.mxu0 0.0
      %1590 = vmatprep.subr.mxu0 0.0
      %1591 = vmatpush1.msra.mxu0 0.0
      %1592 = vmatprep.subr.mxu0 0.0
      %1593 = vmatpush1.msra.mxu0 0.0
      %1594 = vmatprep.subr.mxu0 0.0
      %1595 = vmatpush1.msra.mxu0 0.0
      %1596 = vmatprep.subr.mxu0 0.0
      %1597 = vmatpush1.msra.mxu0 0.0
      %1598 = vmatprep.subr.mxu0 0.0
      %1599 = vmatpush1.msra.mxu0 0.0
      %1600 = vmatprep.subr.mxu0 0.0
      %1601 = vmatpush1.msra.mxu0 0.0
      %1602 = vmatprep.subr.mxu0 0.0
      %1603 = vmatpush1.msra.mxu0 0.0
      %1604 = vmatprep.subr.mxu0 0.0
      %1605 = vmatpush1.msra.mxu0 0.0
      %1606 = vmatprep.subr.mxu0 0.0
      %1607 = vmatpush1.msra.mxu0 0.0
      %1608 = vmatprep.subr.mxu0 0.0
      %1609 = vmatpush1.msra.mxu0 0.0
      %1610 = vmatprep.subr.mxu0 0.0
      %1611 = vmatpush1.msra.mxu0 0.0
      %1612 = vmatprep.subr.mxu0 0.0
      %1613 = vmatpush1.msra.mxu0 0.0
      %1614 = vmatprep.subr.mxu0 0.0
      %1615 = vmatpush1.msra.mxu0 0.0
      %1616 = vmatprep.subr.mxu0 0.0
      %1617 = vmatpush1.msra.mxu0 0.0
      %1618 = vmatprep.subr.mxu0 0.0
      %1619 = vmatpush1.msra.mxu0 0.0
      %1620 = vmatprep.subr.mxu0 0.0
      %1621 = vmatpush1.msra.mxu0 0.0
      %1622 = vmatprep.subr.mxu0 0.0
      %1623 = vmatpush1.msra.mxu0 0.0
      %1624 = vmatprep.mubr.f32.mxu0 0.0
      %1625 = vmatmul.mubr.f32.gmra.mrb[0].mxu0 %v1558
      %v1626 = vpop.f32.mrb[0].mxu0
      %v1627 = vadd.f32 0.0, %v1626
      %v1628 = vpop.f32.mrb[0].mxu0
      %1629 = vdwg.mxu0
      %1631 = vrot.lane.b32.xlu0 %v1627, 16
      %v1632 = vpop.permute.xlu0 %1631
      %v1634 = vsel %vm547, %v1551, %v1632
      %s1635 = scalar_lea.vmem %s6, 32
      %v1636 = vld [vmem:[%s1635] sm:$0xff]
      %v1637 = vld [vmem:[%s1635 + $0x8] sm:$0xff]
      %v1638 = vld [vmem:[%s1635 + $0x10] sm:$0xff]
      %v1639 = vld [vmem:[%s1635 + $0x18] sm:$0xff]
      %s1640 = scalar_lea.vmem %s7, 1
      %v1641 = vld [vmem:[%s1640] sm:$0x1]
      %v1643 = vlaneseq
      %v1644 = vshrl.u32 %v1643, 7
      %v1645 = vsub.s32 0, %v1644
      %v1646 = vrot.slane %v1641, %v1645
      %v1649 = vsel %vm433, %v1634, 0
      %1651 = vmatprep.subr.mxu0 0.0
      %1652 = vmatpush1.msra.mxu0 %v1636
      %1653 = vmatprep.subr.mxu0 0.0
      %1654 = vmatpush1.msra.mxu0 %v1637
      %1655 = vmatprep.subr.mxu0 0.0
      %1656 = vmatpush1.msra.mxu0 %v1638
      %1657 = vmatprep.subr.mxu0 0.0
      %1658 = vmatpush1.msra.mxu0 %v1639
      %1659 = vmatprep.subr.mxu0 0.0
      %1660 = vmatpush1.msra.mxu0 0.0
      %1661 = vmatprep.subr.mxu0 0.0
      %1662 = vmatpush1.msra.mxu0 0.0
      %1663 = vmatprep.subr.mxu0 0.0
      %1664 = vmatpush1.msra.mxu0 0.0
      %1665 = vmatprep.subr.mxu0 0.0
      %1666 = vmatpush1.msra.mxu0 0.0
      %1667 = vmatprep.subr.mxu0 0.0
      %1668 = vmatpush1.msra.mxu0 0.0
      %1669 = vmatprep.subr.mxu0 0.0
      %1670 = vmatpush1.msra.mxu0 0.0
      %1671 = vmatprep.subr.mxu0 0.0
      %1672 = vmatpush1.msra.mxu0 0.0
      %1673 = vmatprep.subr.mxu0 0.0
      %1674 = vmatpush1.msra.mxu0 0.0
      %1675 = vmatprep.subr.mxu0 0.0
      %1676 = vmatpush1.msra.mxu0 0.0
      %1677 = vmatprep.subr.mxu0 0.0
      %1678 = vmatpush1.msra.mxu0 0.0
      %1679 = vmatprep.subr.mxu0 0.0
      %1680 = vmatpush1.msra.mxu0 0.0
      %1681 = vmatprep.subr.mxu0 0.0
      %1682 = vmatpush1.msra.mxu0 0.0
      %1683 = vmatprep.subr.mxu0 0.0
      %1684 = vmatpush1.msra.mxu0 0.0
      %1685 = vmatprep.subr.mxu0 0.0
      %1686 = vmatpush1.msra.mxu0 0.0
      %1687 = vmatprep.subr.mxu0 0.0
      %1688 = vmatpush1.msra.mxu0 0.0
      %1689 = vmatprep.subr.mxu0 0.0
      %1690 = vmatpush1.msra.mxu0 0.0
      %1691 = vmatprep.subr.mxu0 0.0
      %1692 = vmatpush1.msra.mxu0 0.0
      %1693 = vmatprep.subr.mxu0 0.0
      %1694 = vmatpush1.msra.mxu0 0.0
      %1695 = vmatprep.subr.mxu0 0.0
      %1696 = vmatpush1.msra.mxu0 0.0
      %1697 = vmatprep.subr.mxu0 0.0
      %1698 = vmatpush1.msra.mxu0 0.0
      %1699 = vmatprep.subr.mxu0 0.0
      %1700 = vmatpush1.msra.mxu0 0.0
      %1701 = vmatprep.subr.mxu0 0.0
      %1702 = vmatpush1.msra.mxu0 0.0
      %1703 = vmatprep.subr.mxu0 0.0
      %1704 = vmatpush1.msra.mxu0 0.0
      %1705 = vmatprep.subr.mxu0 0.0
      %1706 = vmatpush1.msra.mxu0 0.0
      %1707 = vmatprep.subr.mxu0 0.0
      %1708 = vmatpush1.msra.mxu0 0.0
      %1709 = vmatprep.subr.mxu0 0.0
      %1710 = vmatpush1.msra.mxu0 0.0
      %1711 = vmatprep.subr.mxu0 0.0
      %1712 = vmatpush1.msra.mxu0 0.0
      %1713 = vmatprep.subr.mxu0 0.0
      %1714 = vmatpush1.msra.mxu0 0.0
      %1715 = vmatprep.mubr.f32.mxu0 0.0
      %1716 = vmatmul.mubr.f32.gmra.mrb[0].mxu0 %v1649
      %v1717 = vpop.f32.mrb[0].mxu0
      %v1718 = vadd.f32 %v1646, %v1717
      %v1719 = vpop.f32.mrb[0].mxu0
      %1720 = vdwg.mxu0
      %s1721 = scalar_lea.vmem %s8, 4
      %v1722 = vld [vmem:[%s1721] sm:$0xf]
      %v1723 = vadd.f32 %v1203, %v1718
      %v1724 = vsel %vm433, %v1723, 0.0
      %1725 = vadd.xlane.f32.xlu0 %v1724
      %v1726 = vpop.xlane.xlu0 %1725
      %v1727 = vmul.f32 %v1726, %v437
      %v1728 = vsub.f32 %v1723, %v1727
      %v1729 = vmul.f32 %v1728, %v1728
      %v1730 = vsel %vm433, %v1729, 0.0
      %1731 = vadd.xlane.f32.xlu0 %v1730
      %v1732 = vpop.xlane.xlu0 %1731
      %v1733 = vmul.f32 %v1732, %v437
      %v1734 = vadd.f32 %v1733, 1e-12
      %v1735 = vrsqrt.pop %v1734
      %v1736 = vmul.f32 %v1728, %v1735
      %v1737 = vlaneseq
      %v1738 = vshrl.u32 %v1737, 7
      %v1739 = vsub.s32 0, %v1738
      %v1740 = vrot.slane %v1722, %v1739
      %v1741 = vmul.f32 %v1736, %v1740
      %v1742 = vlaneseq
      %v1743 = vshrl.u32 %v1742, 7
      %v1744 = vsub.s32 1, %v1743
      %v1745 = vrot.slane %v1722, %v1744
      %v1746 = vadd.f32 %v1741, %v1745
      %s1747 = scalar_lea.vmem %s9, 32
      %v1748 = vld [vmem:[%s1747] sm:$0xff]
      %v1749 = vld [vmem:[%s1747 + $0x8] sm:$0xff]
      %v1750 = vld [vmem:[%s1747 + $0x10] sm:$0xff]
      %v1751 = vld [vmem:[%s1747 + $0x18] sm:$0xff]
      %s1752 = scalar_lea.vmem %s10, 1
      %v1753 = vld [vmem:[%s1752] sm:$0x1]
      %v1755 = vlaneseq
      %v1756 = vshrl.u32 %v1755, 7
      %v1757 = vsub.s32 0, %v1756
      %v1758 = vrot.slane %v1753, %v1757
      %v1761 = vsel %vm433, %v1746, 0
      %1763 = vmatprep.subr.mxu0 0.0
      %1764 = vmatpush1.msra.mxu0 %v1748
      %1765 = vmatprep.subr.mxu0 0.0
      %1766 = vmatpush1.msra.mxu0 %v1749
      %1767 = vmatprep.subr.mxu0 0.0
      %1768 = vmatpush1.msra.mxu0 %v1750
      %1769 = vmatprep.subr.mxu0 0.0
      %1770 = vmatpush1.msra.mxu0 %v1751
      %1771 = vmatprep.subr.mxu0 0.0
      %1772 = vmatpush1.msra.mxu0 0.0
      %1773 = vmatprep.subr.mxu0 0.0
      %1774 = vmatpush1.msra.mxu0 0.0
      %1775 = vmatprep.subr.mxu0 0.0
      %1776 = vmatpush1.msra.mxu0 0.0
      %1777 = vmatprep.subr.mxu0 0.0
      %1778 = vmatpush1.msra.mxu0 0.0
      %1779 = vmatprep.subr.mxu0 0.0
      %1780 = vmatpush1.msra.mxu0 0.0
      %1781 = vmatprep.subr.mxu0 0.0
      %1782 = vmatpush1.msra.mxu0 0.0
      %1783 = vmatprep.subr.mxu0 0.0
      %1784 = vmatpush1.msra.mxu0 0.0
      %1785 = vmatprep.subr.mxu0 0.0
      %1786 = vmatpush1.msra.mxu0 0.0
      %1787 = vmatprep.subr.mxu0 0.0
      %1788 = vmatpush1.msra.mxu0 0.0
      %1789 = vmatprep.subr.mxu0 0.0
      %1790 = vmatpush1.msra.mxu0 0.0
      %1791 = vmatprep.subr.mxu0 0.0
      %1792 = vmatpush1.msra.mxu0 0.0
      %1793 = vmatprep.subr.mxu0 0.0
      %1794 = vmatpush1.msra.mxu0 0.0
      %1795 = vmatprep.subr.mxu0 0.0
      %1796 = vmatpush1.msra.mxu0 0.0
      %1797 = vmatprep.subr.mxu0 0.0
      %1798 = vmatpush1.msra.mxu0 0.0
      %1799 = vmatprep.subr.mxu0 0.0
      %1800 = vmatpush1.msra.mxu0 0.0
      %1801 = vmatprep.subr.mxu0 0.0
      %1802 = vmatpush1.msra.mxu0 0.0
      %1803 = vmatprep.subr.mxu0 0.0
      %1804 = vmatpush1.msra.mxu0 0.0
      %1805 = vmatprep.subr.mxu0 0.0
      %1806 = vmatpush1.msra.mxu0 0.0
      %1807 = vmatprep.subr.mxu0 0.0
      %1808 = vmatpush1.msra.mxu0 0.0
      %1809 = vmatprep.subr.mxu0 0.0
      %1810 = vmatpush1.msra.mxu0 0.0
      %1811 = vmatprep.subr.mxu0 0.0
      %1812 = vmatpush1.msra.mxu0 0.0
      %1813 = vmatprep.subr.mxu0 0.0
      %1814 = vmatpush1.msra.mxu0 0.0
      %1815 = vmatprep.subr.mxu0 0.0
      %1816 = vmatpush1.msra.mxu0 0.0
      %1817 = vmatprep.subr.mxu0 0.0
      %1818 = vmatpush1.msra.mxu0 0.0
      %1819 = vmatprep.subr.mxu0 0.0
      %1820 = vmatpush1.msra.mxu0 0.0
      %1821 = vmatprep.subr.mxu0 0.0
      %1822 = vmatpush1.msra.mxu0 0.0
      %1823 = vmatprep.subr.mxu0 0.0
      %1824 = vmatpush1.msra.mxu0 0.0
      %1825 = vmatprep.subr.mxu0 0.0
      %1826 = vmatpush1.msra.mxu0 0.0
      %1827 = vmatprep.mubr.f32.mxu0 0.0
      %1828 = vmatmul.mubr.f32.gmra.mrb[0].mxu0 %v1761
      %v1829 = vpop.f32.mrb[0].mxu0
      %v1830 = vadd.f32 %v1758, %v1829
      %v1831 = vpop.f32.mrb[0].mxu0
      %1832 = vdwg.mxu0
      %v1833 = vmul.f32 %v1830, %v1830
      %v1834 = vmul.f32 %v1830, %v1833
      %v1835 = vmul.f32 %v1834, 0.044715
      %v1836 = vadd.f32 %v1830, %v1835
      %v1837 = vmul.f32 %v1836, 0.7978846
      %v1838 = vtanh.pop %v1837
      %v1839 = vadd.f32 %v1838, 1.0
      %v1840 = vmul.f32 %v1839, 0.5
      %v1841 = vmul.f32 %v1830, %v1840
      %s1842 = scalar_lea.vmem %s11, 64
      %v1843 = vld [vmem:[%s1842] sm:$0xff]
      %v1844 = vld [vmem:[%s1842 + $0x8] sm:$0xff]
      %v1845 = vld [vmem:[%s1842 + $0x10] sm:$0xff]
      %v1846 = vld [vmem:[%s1842 + $0x18] sm:$0xff]
      %v1847 = vld [vmem:[%s1842 + $0x20] sm:$0xff]
      %v1848 = vld [vmem:[%s1842 + $0x28] sm:$0xff]
      %v1849 = vld [vmem:[%s1842 + $0x30] sm:$0xff]
      %v1850 = vld [vmem:[%s1842 + $0x38] sm:$0xff]
      %s1851 = scalar_lea.vmem %s12, 1
      %v1852 = vld [vmem:[%s1851] sm:$0x1]
      %v1854 = vlaneseq
      %v1855 = vshrl.u32 %v1854, 7
      %v1856 = vsub.s32 0, %v1855
      %v1857 = vrot.slane %v1852, %v1856
      %v1860 = vsel %vm1106, %v1841, 0
      %1862 = vmatprep.subr.mxu0 0.0
      %1863 = vmatpush1.msra.mxu0 %v1843
      %1864 = vmatprep.subr.mxu0 0.0
      %1865 = vmatpush1.msra.mxu0 %v1844
      %1866 = vmatprep.subr.mxu0 0.0
      %1867 = vmatpush1.msra.mxu0 %v1845
      %1868 = vmatprep.subr.mxu0 0.0
      %1869 = vmatpush1.msra.mxu0 %v1846
      %1870 = vmatprep.subr.mxu0 0.0
      %1871 = vmatpush1.msra.mxu0 %v1847
      %1872 = vmatprep.subr.mxu0 0.0
      %1873 = vmatpush1.msra.mxu0 %v1848
      %1874 = vmatprep.subr.mxu0 0.0
      %1875 = vmatpush1.msra.mxu0 %v1849
      %1876 = vmatprep.subr.mxu0 0.0
      %1877 = vmatpush1.msra.mxu0 %v1850
      %1878 = vmatprep.subr.mxu0 0.0
      %1879 = vmatpush1.msra.mxu0 0.0
      %1880 = vmatprep.subr.mxu0 0.0
      %1881 = vmatpush1.msra.mxu0 0.0
      %1882 = vmatprep.subr.mxu0 0.0
      %1883 = vmatpush1.msra.mxu0 0.0
      %1884 = vmatprep.subr.mxu0 0.0
      %1885 = vmatpush1.msra.mxu0 0.0
      %1886 = vmatprep.subr.mxu0 0.0
      %1887 = vmatpush1.msra.mxu0 0.0
      %1888 = vmatprep.subr.mxu0 0.0
      %1889 = vmatpush1.msra.mxu0 0.0
      %1890 = vmatprep.subr.mxu0 0.0
      %1891 = vmatpush1.msra.mxu0 0.0
      %1892 = vmatprep.subr.mxu0 0.0
      %1893 = vmatpush1.msra.mxu0 0.0
      %1894 = vmatprep.subr.mxu0 0.0
      %1895 = vmatpush1.msra.mxu0 0.0
      %1896 = vmatprep.subr.mxu0 0.0
      %1897 = vmatpush1.msra.mxu0 0.0
      %1898 = vmatprep.subr.mxu0 0.0
      %1899 = vmatpush1.msra.mxu0 0.0
      %1900 = vmatprep.subr.mxu0 0.0
      %1901 = vmatpush1.msra.mxu0 0.0
      %1902 = vmatprep.subr.mxu0 0.0
      %1903 = vmatpush1.msra.mxu0 0.0
      %1904 = vmatprep.subr.mxu0 0.0
      %1905 = vmatpush1.msra.mxu0 0.0
      %1906 = vmatprep.subr.mxu0 0.0
      %1907 = vmatpush1.msra.mxu0 0.0
      %1908 = vmatprep.subr.mxu0 0.0
      %1909 = vmatpush1.msra.mxu0 0.0
      %1910 = vmatprep.subr.mxu0 0.0
      %1911 = vmatpush1.msra.mxu0 0.0
      %1912 = vmatprep.subr.mxu0 0.0
      %1913 = vmatpush1.msra.mxu0 0.0
      %1914 = vmatprep.subr.mxu0 0.0
      %1915 = vmatpush1.msra.mxu0 0.0
      %1916 = vmatprep.subr.mxu0 0.0
      %1917 = vmatpush1.msra.mxu0 0.0
      %1918 = vmatprep.subr.mxu0 0.0
      %1919 = vmatpush1.msra.mxu0 0.0
      %1920 = vmatprep.subr.mxu0 0.0
      %1921 = vmatpush1.msra.mxu0 0.0
      %1922 = vmatprep.subr.mxu0 0.0
      %1923 = vmatpush1.msra.mxu0 0.0
      %1924 = vmatprep.subr.mxu0 0.0
      %1925 = vmatpush1.msra.mxu0 0.0
      %1926 = vmatprep.mubr.f32.mxu0 0.0
      %1927 = vmatmul.mubr.f32.gmra.mrb[0].mxu0 %v1860
      %v1928 = vpop.f32.mrb[0].mxu0
      %v1929 = vadd.f32 %v1857, %v1928
      %v1930 = vpop.f32.mrb[0].mxu0
      %1931 = vdwg.mxu0
      %v1932 = vadd.f32 %v1746, %v1929
      %v1933 = vsel %vm433, %v1932, 0.0
      %1934 = vadd.xlane.f32.xlu0 %v1933
      %v1935 = vpop.xlane.xlu0 %1934
      %v1936 = vmul.f32 %v1935, %v437
      %v1937 = vsub.f32 %v1932, %v1936
      %v1938 = vmul.f32 %v1937, %v1937
      %v1939 = vsel %vm433, %v1938, 0.0
      %1940 = vadd.xlane.f32.xlu0 %v1939
      %v1941 = vpop.xlane.xlu0 %1940
      %v1942 = vmul.f32 %v1941, %v437
      %v1943 = vadd.f32 %v1942, 1e-12
      %v1944 = vrsqrt.pop %v1943
      %v1945 = vmul.f32 %v1937, %v1944
      %v1946 = vlaneseq
      %v1947 = vshrl.u32 %v1946, 7
      %v1948 = vsub.s32 2, %v1947
      %v1949 = vrot.slane %v1722, %v1948
      %v1950 = vmul.f32 %v1945, %v1949
      %v1951 = vlaneseq
      %v1952 = vshrl.u32 %v1951, 7
      %v1953 = vsub.s32 3, %v1952
      %v1954 = vrot.slane %v1722, %v1953
      %v1955 = vadd.f32 %v1950, %v1954
      %v1956 = vlaneseq
      %v1957 = vand.u32 %v1956, 127
      %v1958 = vlaneseq
      %v1959 = vshrl.u32 %v1958, 7
      %s1960 = smul.u32 %s30, 3
      %s1961 = sld [smem:[#allocation3 + %s1960]]
      %p1962 = scmp.gt.s32.totalorder %s1961, 0
      %s1963 = scalar_select %p1962, %s1961, 0
      %p1964 = scmp.lt.s32.totalorder %s1963, 7
      %s1965 = scalar_select %p1964, %s1963, 7
      %vm1966 = vcmp.eq.s32.totalorder %v1959, 0
      %v1967 = vstv %s1965
      %vm1968 = vcmp.eq.s32.totalorder %v1957, %v1967
      %vm1969 = vmand %vm1966, %vm1968
      %v1970 = vsel %vm1969, 1.0, 0.0
      %s1971 = sadd.s32 %s1960, 1
      %s1972 = sld [smem:[#allocation3 + %s1971]]
      %p1973 = scmp.gt.s32.totalorder %s1972, 0
      %s1974 = scalar_select %p1973, %s1972, 0
      %p1975 = scmp.lt.s32.totalorder %s1974, 7
      %s1976 = scalar_select %p1975, %s1974, 7
      %vm1977 = vcmp.eq.s32.totalorder %v1959, 1
      %v1978 = vstv %s1976
      %vm1979 = vcmp.eq.s32.totalorder %v1957, %v1978
      %vm1980 = vmand %vm1977, %vm1979
      %v1981 = vsel %vm1980, 1.0, %v1970
      %s1982 = sadd.s32 %s1960, 2
      %s1983 = sld [smem:[#allocation3 + %s1982]]
      %p1984 = scmp.gt.s32.totalorder %s1983, 0
      %s1985 = scalar_select %p1984, %s1983, 0
      %p1986 = scmp.lt.s32.totalorder %s1985, 7
      %s1987 = scalar_select %p1986, %s1985, 7
      %vm1988 = vcmp.eq.s32.totalorder %v1959, 2
      %v1989 = vstv %s1987
      %vm1990 = vcmp.eq.s32.totalorder %v1957, %v1989
      %vm1991 = vmand %vm1988, %vm1990
      %v1992 = vsel %vm1991, 1.0, %v1981
      %v1994 = vsel %vm709, %v1992, 0
      %1996 = vmatprep.subr.mxu0 0.0
      %1997 = vmatpush1.msra.mxu0 %v1955
      %1998 = vmatprep.subr.mxu0 0.0
      %1999 = vmatpush1.msra.mxu0 0.0
      %2000 = vmatprep.subr.mxu0 0.0
      %2001 = vmatpush1.msra.mxu0 0.0
      %2002 = vmatprep.subr.mxu0 0.0
      %2003 = vmatpush1.msra.mxu0 0.0
      %2004 = vmatprep.subr.mxu0 0.0
      %2005 = vmatpush1.msra.mxu0 0.0
      %2006 = vmatprep.subr.mxu0 0.0
      %2007 = vmatpush1.msra.mxu0 0.0
      %2008 = vmatprep.subr.mxu0 0.0
      %2009 = vmatpush1.msra.mxu0 0.0
      %2010 = vmatprep.subr.mxu0 0.0
      %2011 = vmatpush1.msra.mxu0 0.0
      %2012 = vmatprep.subr.mxu0 0.0
      %2013 = vmatpush1.msra.mxu0 0.0
      %2014 = vmatprep.subr.mxu0 0.0
      %2015 = vmatpush1.msra.mxu0 0.0
      %2016 = vmatprep.subr.mxu0 0.0
      %2017 = vmatpush1.msra.mxu0 0.0
      %2018 = vmatprep.subr.mxu0 0.0
      %2019 = vmatpush1.msra.mxu0 0.0
      %2020 = vmatprep.subr.mxu0 0.0
      %2021 = vmatpush1.msra.mxu0 0.0
      %2022 = vmatprep.subr.mxu0 0.0
      %2023 = vmatpush1.msra.mxu0 0.0
      %2024 = vmatprep.subr.mxu0 0.0
      %2025 = vmatpush1.msra.mxu0 0.0
      %2026 = vmatprep.subr.mxu0 0.0
      %2027 = vmatpush1.msra.mxu0 0.0
      %2028 = vmatprep.subr.mxu0 0.0
      %2029 = vmatpush1.msra.mxu0 0.0
      %2030 = vmatprep.subr.mxu0 0.0
      %2031 = vmatpush1.msra.mxu0 0.0
      %2032 = vmatprep.subr.mxu0 0.0
      %2033 = vmatpush1.msra.mxu0 0.0
      %2034 = vmatprep.subr.mxu0 0.0
      %2035 = vmatpush1.msra.mxu0 0.0
      %2036 = vmatprep.subr.mxu0 0.0
      %2037 = vmatpush1.msra.mxu0 0.0
      %2038 = vmatprep.subr.mxu0 0.0
      %2039 = vmatpush1.msra.mxu0 0.0
      %2040 = vmatprep.subr.mxu0 0.0
      %2041 = vmatpush1.msra.mxu0 0.0
      %2042 = vmatprep.subr.mxu0 0.0
      %2043 = vmatpush1.msra.mxu0 0.0
      %2044 = vmatprep.subr.mxu0 0.0
      %2045 = vmatpush1.msra.mxu0 0.0
      %2046 = vmatprep.subr.mxu0 0.0
      %2047 = vmatpush1.msra.mxu0 0.0
      %2048 = vmatprep.subr.mxu0 0.0
      %2049 = vmatpush1.msra.mxu0 0.0
      %2050 = vmatprep.subr.mxu0 0.0
      %2051 = vmatpush1.msra.mxu0 0.0
      %2052 = vmatprep.subr.mxu0 0.0
      %2053 = vmatpush1.msra.mxu0 0.0
      %2054 = vmatprep.subr.mxu0 0.0
      %2055 = vmatpush1.msra.mxu0 0.0
      %2056 = vmatprep.subr.mxu0 0.0
      %2057 = vmatpush1.msra.mxu0 0.0
      %2058 = vmatprep.subr.mxu0 0.0
      %2059 = vmatpush1.msra.mxu0 0.0
      %2060 = vmatprep.mubr.f32.mxu0 0.0
      %2061 = vmatmul.mubr.f32.gmra.mrb[0].mxu0 %v1994
      %v2062 = vpop.f32.mrb[0].mxu0
      %v2063 = vadd.f32 0.0, %v2062
      %v2064 = vpop.f32.mrb[0].mxu0
      %2065 = vdwg.mxu0
      %vm2066 = vcmask 256000
      %2067 = vst.msk [vmem:[%s429] sm:$0x7] %vm2066, %v2063
      %p2068 = scmp.lt.s32.totalorder %s30, 1
      %s2069 = scalar_select %p2068, %s30, 1
      %s2070 = smul.addr %s2069, 4
      %s2071 = scalar_lea.vmem %s13, %s2070
      // Predicated region
      $region69: #{bert_forward.1} parent=67 // pred_check
        %p2072 = pneg %p310
      $region70: #{bert_forward.1} parent=67 // pred_check_branch
        %2074 = sbr.rel (%p2072) target = $region72
      $region71: #{bert_forward.1} parent=67 // pred_region
        _
      $region72: #{bert_forward.1} parent=67 // pred_fallthru
        _
    $region68: #{bert_forward.1} parent=5 // pred_fallthru
      _
    %p2075 = scmp.le.s32.totalorder 2, %s25
    // Predicated region
    $region73: #{bert_forward.1} parent=5 // pred_check
      %p2076 = pneg %p2075
    $region74: #{bert_forward.1} parent=5 // pred_check_branch
      %2078 = sbr.rel (%p2076) target = $region76
    $region75: #{bert_forward.1} parent=5 // pred_region
      %s2079 = ssub.s32 %s25, 2
      // Predicated region
      $region77: #{bert_forward.1} parent=75 // pred_check
        %p2080 = pneg %p316
      $region78: #{bert_forward.1} parent=75 // pred_check_branch
        %2082 = sbr.rel (%p2080) target = $region80
      $region79: #{bert_forward.1} parent=75 // pred_region
        %p2083 = scmp.lt.s32.totalorder %s31, 1
        %s2084 = scalar_select %p2083, %s31, 1
        %s2085 = smul.addr %s2084, 4
        %s2086 = scalar_lea.vmem %s13, %s2085
      $region80: #{bert_forward.1} parent=75 // pred_fallthru
        _
    $region76: #{bert_forward.1} parent=5 // pred_fallthru
      _
  $region6: #{bert_forward.1} parent=0 // loop_footer
    %s29 = sadd.s32 1, %s25
  $region7: #{bert_forward.1} parent=0 // loop_footer_branch
    %24 = sbr.rel target = $region3
  $region8: #{bert_forward.1} parent=0 // loop_exit
    _

</llo_original>
